<compile_context>
chip_gen: v7x
topology: tpu7x:2x2x1
jax: 0.10.0
libtpu: 0.0.40
codegen_flags: <defaults>
</compile_context>

<pallas_src>
import numpy as np
import jax
import jax.numpy as jnp
from jax import lax
from jax.experimental import pallas as pl
from jax.experimental.pallas import tpu as pltpu


# ------------------------------ geometry helpers --------------------------- #

def _round_up(x, m):
    return (x + m - 1) // m * m


def _geom(H, W):
    """Padded-flat geometry for an (H, W) plane with a 1-pixel zero ring."""
    Wp = W + 2                               # padded width
    P0 = Wp + 1                              # flat index of interior pixel (0, 0)
    Mo = H * Wp                              # contiguous range covering all interior pixels
    MP = _round_up((H + 2) * Wp + 2, 8)      # buffer length (+2 tail for the (2,2) tap)
    offs = tuple((dy - 1) * Wp + (dx - 1) for dy in range(3) for dx in range(3))
    return Wp, P0, Mo, MP, offs


def _valid_mask(H, W):
    """(1, Mo) f32 mask: 1 at real pixels, 0 at the interleaved padding columns."""
    Wp, P0, Mo, _, _ = _geom(H, W)
    col = (np.arange(Mo) + P0) % Wp
    return jnp.asarray(((col >= 1) & (col <= W)).astype(np.float32).reshape(1, Mo))


# --------------------------------- kernels --------------------------------- #

def _make_tree1_kernel(H, W, has_shortcut):
    """Fused level-1 Tree: left BasicBlock -> right BasicBlock -> Root."""
    _, P0, Mo, _, offs = _geom(H, W)

    def conv3x3(src_ref, w_ref):
        # src_ref: (C, MP) f32 padded-flat ; w_ref: (Cout, 9*C) bf16 -> (Cout, Mo) f32
        col = jnp.concatenate(
            [src_ref[:, P0 + o:P0 + o + Mo] for o in offs], axis=0
        ).astype(jnp.bfloat16)                 # in-VMEM K-dense im2col (one matmul)
        return jnp.dot(w_ref[...], col, preferred_element_type=jnp.float32)

    def store_padded(dst_ref, val, mask):
        # zero the padding ring so dst can directly feed the next 3x3 conv
        dst_ref[...] = jnp.zeros(dst_ref.shape, dst_ref.dtype)
        dst_ref[:, P0:P0 + Mo] = (val * mask).astype(dst_ref.dtype)

    def kernel(*refs):
        if has_shortcut:
            (x_ref, m_ref,
             w1, s1, b1, w2, s2, b2, wsc, ssc, bsc,
             w1r, s1r, b1r, w2r, s2r, b2r,
             wrt, srt, brt,
             o_ref, hbuf, o1buf) = refs
        else:
            (x_ref, m_ref,
             w1, s1, b1, w2, s2, b2,
             w1r, s1r, b1r, w2r, s2r, b2r,
             wrt, srt, brt,
             o_ref, hbuf, o1buf) = refs

        mask = m_ref[...]                                            # (1, Mo) f32

        # --------------------------- left BasicBlock ----------------------- #
        h = jnp.maximum(conv3x3(x_ref, w1) * s1[...] + b1[...], 0.0)
        store_padded(hbuf, h, mask)
        o = conv3x3(hbuf, w2) * s2[...] + b2[...]
        if has_shortcut:                                             # 1x1 conv + BN
            sc = jnp.dot(wsc[...], x_ref[:, P0:P0 + Mo].astype(jnp.bfloat16),
                         preferred_element_type=jnp.float32) * ssc[...] + bsc[...]
        else:                                                        # identity
            sc = x_ref[:, P0:P0 + Mo]
        out1 = jnp.maximum(o + sc, 0.0)                              # (Cout, Mo) f32
        store_padded(o1buf, out1, mask)

        # --------------------- right BasicBlock (identity) ----------------- #
        h2 = jnp.maximum(conv3x3(o1buf, w1r) * s1r[...] + b1r[...], 0.0)
        store_padded(hbuf, h2, mask)                                 # reuse scratch
        o2 = conv3x3(hbuf, w2r) * s2r[...] + b2r[...]
        out2 = jnp.maximum(o2 + out1, 0.0)

        # ------------- Root: cat(channels) -> 1x1 conv -> BN -> ReLU ------- #
        cat = jnp.concatenate([out1, out2], axis=0).astype(jnp.bfloat16)
        r = jnp.dot(wrt[...], cat, preferred_element_type=jnp.float32)
        store_padded(o_ref, jnp.maximum(r * srt[...] + brt[...], 0.0), mask)

    return kernel


def _make_root_kernel(H, W):
    """Standalone Root kernel (only used when level > 1)."""
    _, P0, Mo, _, _ = _geom(H, W)

    def kernel(x1_ref, x2_ref, m_ref, w, s, b, o_ref):
        mask = m_ref[...]
        cat = jnp.concatenate(
            [x1_ref[:, P0:P0 + Mo], x2_ref[:, P0:P0 + Mo]], axis=0
        ).astype(jnp.bfloat16)
        r = jnp.dot(w[...], cat, preferred_element_type=jnp.float32)
        r = jnp.maximum(r * s[...] + b[...], 0.0)
        o_ref[...] = jnp.zeros(o_ref.shape, o_ref.dtype)
        o_ref[:, P0:P0 + Mo] = r * mask

    return kernel


# ------------------------------ pallas wrappers ----------------------------- #

_MOSAIC_PARAMS = pltpu.CompilerParams(
    dimension_semantics=("parallel",),          # batch axis -> both v7x TensorCores
    vmem_limit_bytes=32 * 1024 * 1024,
)


def _const_specs(arrs):
    # weights / BN params / mask: full-array blocks with constant index maps
    # (fetched once, stay VMEM-resident across grid steps).
    return [pl.BlockSpec(a.shape, lambda n: (0, 0)) for a in arrs]


def _tree1_call(xp, mask, p, *, H, W):
    """One fused pallas_call for a level-1 Tree.  xp: (N, Cin, MP) f32 padded-flat."""
    N, Cin, MP = xp.shape
    L, R = p['left'], p['right']
    Cout = p['root_w'].shape[0]
    assert not R['has_shortcut']
    has_sc = L['has_shortcut']
    bf = lambda w: w.astype(jnp.bfloat16)

    ins = [xp, mask, bf(L['w1']), *L['bn1'], bf(L['w2']), *L['bn2']]
    if has_sc:
        ins += [bf(L['ws']), *L['bns']]
    ins += [bf(R['w1']), *R['bn1'], bf(R['w2']), *R['bn2'],
            bf(p['root_w']), *p['root_bn']]

    in_specs = ([pl.BlockSpec((None, Cin, MP), lambda n: (n, 0, 0))]
                + _const_specs(ins[1:]))

    return pl.pallas_call(
        _make_tree1_kernel(H, W, has_sc),
        grid=(N,),
        out_shape=jax.ShapeDtypeStruct((N, Cout, MP), jnp.float32),
        in_specs=in_specs,
        out_specs=pl.BlockSpec((None, Cout, MP), lambda n: (n, 0, 0)),
        scratch_shapes=[pltpu.VMEM((Cout, MP), jnp.float32),
                        pltpu.VMEM((Cout, MP), jnp.float32)],
        compiler_params=_MOSAIC_PARAMS,
    )(*ins)


def _root_call(x1, x2, mask, w, bn, *, H, W):
    N, C, MP = x1.shape
    s, b = bn
    ins = [x1, x2, mask, w.astype(jnp.bfloat16), s, b]
    in_specs = ([pl.BlockSpec((None, C, MP), lambda n: (n, 0, 0)),
                 pl.BlockSpec((None, C, MP), lambda n: (n, 0, 0))]
                + _const_specs(ins[2:]))
    return pl.pallas_call(
        _make_root_kernel(H, W),
        grid=(N,),
        out_shape=jax.ShapeDtypeStruct((N, w.shape[0], MP), jnp.float32),
        in_specs=in_specs,
        out_specs=pl.BlockSpec((None, w.shape[0], MP), lambda n: (n, 0, 0)),
        compiler_params=_MOSAIC_PARAMS,
    )(*ins)


# ------------------------------- layout glue -------------------------------- #

def _to_padded_flat(x, MP):
    N, C, H, W = x.shape
    xp = jnp.pad(x, ((0, 0), (0, 0), (1, 1), (1, 1)))
    xf = xp.reshape(N, C, (H + 2) * (W + 2))
    return jnp.pad(xf, ((0, 0), (0, 0), (0, MP - (H + 2) * (W + 2))))


def _from_padded_flat(y, H, W):
    N, C, _ = y.shape
    yi = y[:, :, :(H + 2) * (W + 2)].reshape(N, C, H + 2, W + 2)
    return yi[:, :, 1:H + 1, 1:W + 1]


def tree_forward(x, params):
    """Forward pass of Tree(BasicBlock, ...).  x is NCHW f32, like the torch module."""
    N, Cin, H, W = x.shape
    _, _, _, MP, _ = _geom(H, W)
    mask = _valid_mask(H, W)
    xp = _to_padded_flat(x, MP)

    def run(xp_flat, p):
        if p['level'] == 1:
            return _tree1_call(xp_flat, mask, p, H=H, W=W)
        o1 = run(xp_flat, p['left'])
        o2 = run(o1, p['right'])
        return _root_call(o1, o2, mask, p['root_w'], p['root_bn'], H=H, W=W)

    return _from_padded_flat(run(xp, params), H, W)


# ---------------------------- parameter construction ------------------------ #

def _bf16_exact(w):
    # keep reference-vs-kernel delta down to activation rounding only
    return w.astype(jnp.bfloat16).astype(jnp.float32)


def _fold_bn(gamma, beta, mean, var, eps=1e-5):
    s = gamma / jnp.sqrt(var + eps)
    b = beta - mean * s
    return s.reshape(-1, 1).astype(jnp.float32), b.reshape(-1, 1).astype(jnp.float32)


def _init_bn(key, c):
    k1, k2, k3, k4 = jax.random.split(key, 4)
    gamma = jax.random.uniform(k1, (c,), jnp.float32, 0.5, 1.5)
    beta = 0.1 * jax.random.normal(k2, (c,), jnp.float32)
    mean = 0.1 * jax.random.normal(k3, (c,), jnp.float32)
    var = jax.random.uniform(k4, (c,), jnp.float32, 0.5, 1.5)
    return _fold_bn(gamma, beta, mean, var)


def _init_block(key, cin, cout, stride=1):
    assert stride == 1, "fused Tree kernel implements stride=1 (module default)"
    ks = jax.random.split(key, 6)
    p = {'has_shortcut': cin != cout}
    p['w1'] = _bf16_exact(0.1 * jax.random.normal(ks[0], (cout, 9 * cin), jnp.float32))
    p['bn1'] = _init_bn(ks[1], cout)
    p['w2'] = _bf16_exact(0.1 * jax.random.normal(ks[2], (cout, 9 * cout), jnp.float32))
    p['bn2'] = _init_bn(ks[3], cout)
    if p['has_shortcut']:
        p['ws'] = _bf16_exact(0.1 * jax.random.normal(ks[4], (cout, cin), jnp.float32))
        p['bns'] = _init_bn(ks[5], cout)
    return p


def init_tree(key, cin, cout, level=1, stride=1):
    k_rw, k_rbn, k_l, k_r = jax.random.split(key, 4)
    p = {'level': level}
    p['root_w'] = _bf16_exact(0.1 * jax.random.normal(k_rw, (cout, 2 * cout), jnp.float32))
    p['root_bn'] = _init_bn(k_rbn, cout)
    if level == 1:
        p['left'] = _init_block(k_l, cin, cout, stride)
        p['right'] = _init_block(k_r, cout, cout, 1)
    else:
        p['left'] = init_tree(k_l, cin, cout, level - 1, stride)
        p['right'] = init_tree(k_r, cout, cout, level - 1, 1)
    return p


# --------------------------- pure-JAX reference check ----------------------- #

def _nchw_conv(x, w, pad):
    return lax.conv_general_dilated(
        x, w, (1, 1), [(pad, pad), (pad, pad)],
        dimension_numbers=('NCHW', 'OIHW', 'NCHW'))


def _ref_bn(x, bn):
    s, b = bn
    c = s.shape[0]
    return x * s.reshape(1, c, 1, 1) + b.reshape(1, c, 1, 1)


def _ref_conv3x3(x, w_k):
    cout = w_k.shape[0]
    cin = w_k.shape[1] // 9
    w = w_k.reshape(cout, 3, 3, cin).transpose(0, 3, 1, 2)     # -> OIHW
    return _nchw_conv(x, w, 1)


def _ref_block(x, p):
    h = jnp.maximum(_ref_bn(_ref_conv3x3(x, p['w1']), p['bn1']), 0.0)
    o = _ref_bn(_ref_conv3x3(h, p['w2']), p['bn2'])
    if p['has_shortcut']:
        cout, cin = p['ws'].shape
        sc = _ref_bn(_nchw_conv(x, p['ws'].reshape(cout, cin, 1, 1), 0), p['bns'])
    else:
        sc = x
    return jnp.maximum(o + sc, 0.0)


def _ref_root(o1, o2, w, bn):
    cout, c2 = w.shape
    cat = jnp.concatenate([o1, o2], axis=1)
    return jnp.maximum(_ref_bn(_nchw_conv(cat, w.reshape(cout, c2, 1, 1), 0), bn), 0.0)


def _ref_tree(x, p):
    child = _ref_block if p['level'] == 1 else _ref_tree
    o1 = child(x, p['left'])
    o2 = child(o1, p['right'])
    return _ref_root(o1, o2, p['root_w'], p['root_bn'])


# ------------------------------------ main ---------------------------------- #

if __name__ == "__main__":
    key = jax.random.PRNGKey(0)
    kx, kp1, kp2 = jax.random.split(key, 3)

    # Module-default config: level=1, stride=1.  NCHW input, like the torch module.
    N, Cin, Cout, H, W = 2, 8, 16, 8, 8
    x = _bf16_exact(jax.random.normal(kx, (N, Cin, H, W), jnp.float32))

    params1 = init_tree(kp1, Cin, Cout, level=1, stride=1)
    out = jax.block_until_ready(tree_forward(x, params1))
    assert out.shape == (N, Cout, H, W), out.shape
    ref = _ref_tree(x, params1)
    err = float(jnp.max(jnp.abs(out - ref))) / (float(jnp.max(jnp.abs(ref))) + 1e-6)
    assert err < 2e-2, f"level-1 mismatch vs reference, rel-max-err={err}"

    # level=2 exercises the recursive Tree composition, the standalone Root kernel
    # and the no-shortcut BasicBlock kernel variant.
    params2 = init_tree(kp2, Cin, Cout, level=2, stride=1)
    out2 = jax.block_until_ready(tree_forward(x, params2))
    ref2 = _ref_tree(x, params2)
    err2 = float(jnp.max(jnp.abs(out2 - ref2))) / (float(jnp.max(jnp.abs(ref2))) + 1e-6)
    assert err2 < 2e-2, f"level-2 mismatch vs reference, rel-max-err={err2}"

    print("KERNEL_OK")
</pallas_src>

<mosaic_0001>
module attributes {stable_mosaic.version = 11 : i64} {
  func.func @kernel(%arg0: i32, %arg1: memref<1x8x104xf32, #tpu.memory_space<vmem>>, %arg2: memref<1x80xf32, #tpu.memory_space<vmem>>, %arg3: memref<16x72xbf16, #tpu.memory_space<vmem>>, %arg4: memref<16x1xf32, #tpu.memory_space<vmem>>, %arg5: memref<16x1xf32, #tpu.memory_space<vmem>>, %arg6: memref<16x144xbf16, #tpu.memory_space<vmem>>, %arg7: memref<16x1xf32, #tpu.memory_space<vmem>>, %arg8: memref<16x1xf32, #tpu.memory_space<vmem>>, %arg9: memref<16x8xbf16, #tpu.memory_space<vmem>>, %arg10: memref<16x1xf32, #tpu.memory_space<vmem>>, %arg11: memref<16x1xf32, #tpu.memory_space<vmem>>, %arg12: memref<16x144xbf16, #tpu.memory_space<vmem>>, %arg13: memref<16x1xf32, #tpu.memory_space<vmem>>, %arg14: memref<16x1xf32, #tpu.memory_space<vmem>>, %arg15: memref<16x144xbf16, #tpu.memory_space<vmem>>, %arg16: memref<16x1xf32, #tpu.memory_space<vmem>>, %arg17: memref<16x1xf32, #tpu.memory_space<vmem>>, %arg18: memref<16x32xbf16, #tpu.memory_space<vmem>>, %arg19: memref<16x1xf32, #tpu.memory_space<vmem>>, %arg20: memref<16x1xf32, #tpu.memory_space<vmem>>, %arg21: memref<1x16x104xf32, #tpu.memory_space<vmem>>, %arg22: memref<16x104xf32, #tpu.memory_space<vmem>>, %arg23: memref<16x104xf32, #tpu.memory_space<vmem>>) attributes {dimension_semantics = [#tpu.dimension_semantics<parallel>], iteration_bounds = array<i64: 2>, scalar_prefetch = 0 : i64, scratch_operands = 2 : i64, tpu.core_type = #tpu.core_type<tc>, window_params = [{transform_indices = @transform_0, window_bounds = array<i64: 1, 8, 104>}, {pipeline_mode = #tpu.pipeline_mode<synchronous>, transform_indices = @transform_1, window_bounds = array<i64: 1, 80>}, {pipeline_mode = #tpu.pipeline_mode<synchronous>, transform_indices = @transform_2, window_bounds = array<i64: 16, 72>}, {pipeline_mode = #tpu.pipeline_mode<synchronous>, transform_indices = @transform_3, window_bounds = array<i64: 16, 1>}, {pipeline_mode = #tpu.pipeline_mode<synchronous>, transform_indices = @transform_4, window_bounds = array<i64: 16, 1>}, {pipeline_mode = #tpu.pipeline_mode<synchronous>, transform_indices = @transform_5, window_bounds = array<i64: 16, 144>}, {pipeline_mode = #tpu.pipeline_mode<synchronous>, transform_indices = @transform_6, window_bounds = array<i64: 16, 1>}, {pipeline_mode = #tpu.pipeline_mode<synchronous>, transform_indices = @transform_7, window_bounds = array<i64: 16, 1>}, {pipeline_mode = #tpu.pipeline_mode<synchronous>, transform_indices = @transform_8, window_bounds = array<i64: 16, 8>}, {pipeline_mode = #tpu.pipeline_mode<synchronous>, transform_indices = @transform_9, window_bounds = array<i64: 16, 1>}, {pipeline_mode = #tpu.pipeline_mode<synchronous>, transform_indices = @transform_10, window_bounds = array<i64: 16, 1>}, {pipeline_mode = #tpu.pipeline_mode<synchronous>, transform_indices = @transform_11, window_bounds = array<i64: 16, 144>}, {pipeline_mode = #tpu.pipeline_mode<synchronous>, transform_indices = @transform_12, window_bounds = array<i64: 16, 1>}, {pipeline_mode = #tpu.pipeline_mode<synchronous>, transform_indices = @transform_13, window_bounds = array<i64: 16, 1>}, {pipeline_mode = #tpu.pipeline_mode<synchronous>, transform_indices = @transform_14, window_bounds = array<i64: 16, 144>}, {pipeline_mode = #tpu.pipeline_mode<synchronous>, transform_indices = @transform_15, window_bounds = array<i64: 16, 1>}, {pipeline_mode = #tpu.pipeline_mode<synchronous>, transform_indices = @transform_16, window_bounds = array<i64: 16, 1>}, {pipeline_mode = #tpu.pipeline_mode<synchronous>, transform_indices = @transform_17, window_bounds = array<i64: 16, 32>}, {pipeline_mode = #tpu.pipeline_mode<synchronous>, transform_indices = @transform_18, window_bounds = array<i64: 16, 1>}, {pipeline_mode = #tpu.pipeline_mode<synchronous>, transform_indices = @transform_19, window_bounds = array<i64: 16, 1>}, {transform_indices = @transform_20, window_bounds = array<i64: 1, 16, 104>}]} {
    %c0 = arith.constant 0 : index
    %c0_0 = arith.constant 0 : index
    %0 = vector.load %arg2[%c0, %c0_0] : memref<1x80xf32, #tpu.memory_space<vmem>>, vector<1x80xf32>
    %c0_1 = arith.constant 0 : index
    %c0_2 = arith.constant 0 : index
    %c0_3 = arith.constant 0 : index
    %1 = vector.load %arg1[%c0_1, %c0_2, %c0_3] : memref<1x8x104xf32, #tpu.memory_space<vmem>>, vector<1x8x80xf32>
    %2 = vector.shape_cast %1 : vector<1x8x80xf32> to vector<8x80xf32>
    %c0_4 = arith.constant 0 : index
    %c0_5 = arith.constant 0 : index
    %c1 = arith.constant 1 : index
    %3 = vector.load %arg1[%c0_4, %c0_5, %c1] : memref<1x8x104xf32, #tpu.memory_space<vmem>>, vector<1x8x80xf32>
    %4 = vector.shape_cast %3 : vector<1x8x80xf32> to vector<8x80xf32>
    %c0_6 = arith.constant 0 : index
    %c0_7 = arith.constant 0 : index
    %c2 = arith.constant 2 : index
    %5 = vector.load %arg1[%c0_6, %c0_7, %c2] : memref<1x8x104xf32, #tpu.memory_space<vmem>>, vector<1x8x80xf32>
    %6 = vector.shape_cast %5 : vector<1x8x80xf32> to vector<8x80xf32>
    %c0_8 = arith.constant 0 : index
    %c0_9 = arith.constant 0 : index
    %c10 = arith.constant 10 : index
    %7 = vector.load %arg1[%c0_8, %c0_9, %c10] : memref<1x8x104xf32, #tpu.memory_space<vmem>>, vector<1x8x80xf32>
    %8 = vector.shape_cast %7 : vector<1x8x80xf32> to vector<8x80xf32>
    %c0_10 = arith.constant 0 : index
    %c0_11 = arith.constant 0 : index
    %c11 = arith.constant 11 : index
    %9 = vector.load %arg1[%c0_10, %c0_11, %c11] : memref<1x8x104xf32, #tpu.memory_space<vmem>>, vector<1x8x80xf32>
    %10 = vector.shape_cast %9 : vector<1x8x80xf32> to vector<8x80xf32>
    %c0_12 = arith.constant 0 : index
    %c0_13 = arith.constant 0 : index
    %c12 = arith.constant 12 : index
    %11 = vector.load %arg1[%c0_12, %c0_13, %c12] : memref<1x8x104xf32, #tpu.memory_space<vmem>>, vector<1x8x80xf32>
    %12 = vector.shape_cast %11 : vector<1x8x80xf32> to vector<8x80xf32>
    %c0_14 = arith.constant 0 : index
    %c0_15 = arith.constant 0 : index
    %c20 = arith.constant 20 : index
    %13 = vector.load %arg1[%c0_14, %c0_15, %c20] : memref<1x8x104xf32, #tpu.memory_space<vmem>>, vector<1x8x80xf32>
    %14 = vector.shape_cast %13 : vector<1x8x80xf32> to vector<8x80xf32>
    %c0_16 = arith.constant 0 : index
    %c0_17 = arith.constant 0 : index
    %c21 = arith.constant 21 : index
    %15 = vector.load %arg1[%c0_16, %c0_17, %c21] : memref<1x8x104xf32, #tpu.memory_space<vmem>>, vector<1x8x80xf32>
    %16 = vector.shape_cast %15 : vector<1x8x80xf32> to vector<8x80xf32>
    %c0_18 = arith.constant 0 : index
    %c0_19 = arith.constant 0 : index
    %c22 = arith.constant 22 : index
    %17 = vector.load %arg1[%c0_18, %c0_19, %c22] : memref<1x8x104xf32, #tpu.memory_space<vmem>>, vector<1x8x80xf32>
    %18 = vector.shape_cast %17 : vector<1x8x80xf32> to vector<8x80xf32>
    %19 = tpu.concatenate %2, %4, %6, %8, %10, %12, %14, %16, %18 in 0 : vector<8x80xf32>, vector<8x80xf32>, vector<8x80xf32>, vector<8x80xf32>, vector<8x80xf32>, vector<8x80xf32>, vector<8x80xf32>, vector<8x80xf32>, vector<8x80xf32> -> vector<72x80xf32>
    %20 = arith.truncf %19 : vector<72x80xf32> to vector<72x80xbf16>
    %c0_20 = arith.constant 0 : index
    %c0_21 = arith.constant 0 : index
    %21 = vector.load %arg3[%c0_20, %c0_21] : memref<16x72xbf16, #tpu.memory_space<vmem>>, vector<16x72xbf16>
    %cst = arith.constant dense<0.000000e+00> : vector<16x80xf32>
    %22 = tpu.matmul %21, %20, %cst {dimension_numbers = #tpu.dot_dimension_numbers<[1], [0], [0], [1], [0, 0, 1, 1], [], []>} : vector<16x72xbf16>, vector<72x80xbf16>, vector<16x80xf32> -> vector<16x80xf32>
    %c0_22 = arith.constant 0 : index
    %c0_23 = arith.constant 0 : index
    %23 = vector.load %arg4[%c0_22, %c0_23] : memref<16x1xf32, #tpu.memory_space<vmem>>, vector<16x1xf32>
    %24 = vector.broadcast %23 : vector<16x1xf32> to vector<16x80xf32>
    %25 = arith.mulf %22, %24 : vector<16x80xf32>
    %c0_24 = arith.constant 0 : index
    %c0_25 = arith.constant 0 : index
    %26 = vector.load %arg5[%c0_24, %c0_25] : memref<16x1xf32, #tpu.memory_space<vmem>>, vector<16x1xf32>
    %27 = vector.broadcast %26 : vector<16x1xf32> to vector<16x80xf32>
    %28 = arith.addf %25, %27 : vector<16x80xf32>
    %cst_26 = arith.constant 0.000000e+00 : f32
    %29 = vector.broadcast %cst_26 : f32 to vector<16x80xf32>
    %30 = arith.maximumf %28, %29 : vector<16x80xf32>
    %cst_27 = arith.constant 0.000000e+00 : f32
    %31 = vector.broadcast %cst_27 : f32 to vector<16x104xf32>
    %c0_28 = arith.constant 0 : index
    %c0_29 = arith.constant 0 : index
    %32 = vector.load %arg22[%c0_28, %c0_29] : memref<16x104xf32, #tpu.memory_space<vmem>>, vector<16x104xf32>
    tpu.vector_store %arg22[%c0_28, %c0_29], %31 {strides = array<i32>} : memref<16x104xf32, #tpu.memory_space<vmem>>, vector<16x104xf32>,
    %33 = vector.broadcast %0 : vector<1x80xf32> to vector<16x80xf32>
    %34 = arith.mulf %30, %33 : vector<16x80xf32>
    %c0_30 = arith.constant 0 : index
    %c11_31 = arith.constant 11 : index
    %35 = vector.load %arg22[%c0_30, %c11_31] : memref<16x104xf32, #tpu.memory_space<vmem>>, vector<16x80xf32>
    tpu.vector_store %arg22[%c0_30, %c11_31], %34 {strides = array<i32>} : memref<16x104xf32, #tpu.memory_space<vmem>>, vector<16x80xf32>,
    %c0_32 = arith.constant 0 : index
    %c0_33 = arith.constant 0 : index
    %36 = vector.load %arg22[%c0_32, %c0_33] : memref<16x104xf32, #tpu.memory_space<vmem>>, vector<16x80xf32>
    %c0_34 = arith.constant 0 : index
    %c1_35 = arith.constant 1 : index
    %37 = vector.load %arg22[%c0_34, %c1_35] : memref<16x104xf32, #tpu.memory_space<vmem>>, vector<16x80xf32>
    %c0_36 = arith.constant 0 : index
    %c2_37 = arith.constant 2 : index
    %38 = vector.load %arg22[%c0_36, %c2_37] : memref<16x104xf32, #tpu.memory_space<vmem>>, vector<16x80xf32>
    %c0_38 = arith.constant 0 : index
    %c10_39 = arith.constant 10 : index
    %39 = vector.load %arg22[%c0_38, %c10_39] : memref<16x104xf32, #tpu.memory_space<vmem>>, vector<16x80xf32>
    %c0_40 = arith.constant 0 : index
    %c11_41 = arith.constant 11 : index
    %40 = vector.load %arg22[%c0_40, %c11_41] : memref<16x104xf32, #tpu.memory_space<vmem>>, vector<16x80xf32>
    %c0_42 = arith.constant 0 : index
    %c12_43 = arith.constant 12 : index
    %41 = vector.load %arg22[%c0_42, %c12_43] : memref<16x104xf32, #tpu.memory_space<vmem>>, vector<16x80xf32>
    %c0_44 = arith.constant 0 : index
    %c20_45 = arith.constant 20 : index
    %42 = vector.load %arg22[%c0_44, %c20_45] : memref<16x104xf32, #tpu.memory_space<vmem>>, vector<16x80xf32>
    %c0_46 = arith.constant 0 : index
    %c21_47 = arith.constant 21 : index
    %43 = vector.load %arg22[%c0_46, %c21_47] : memref<16x104xf32, #tpu.memory_space<vmem>>, vector<16x80xf32>
    %c0_48 = arith.constant 0 : index
    %c22_49 = arith.constant 22 : index
    %44 = vector.load %arg22[%c0_48, %c22_49] : memref<16x104xf32, #tpu.memory_space<vmem>>, vector<16x80xf32>
    %45 = tpu.concatenate %36, %37, %38, %39, %40, %41, %42, %43, %44 in 0 : vector<16x80xf32>, vector<16x80xf32>, vector<16x80xf32>, vector<16x80xf32>, vector<16x80xf32>, vector<16x80xf32>, vector<16x80xf32>, vector<16x80xf32>, vector<16x80xf32> -> vector<144x80xf32>
    %46 = arith.truncf %45 : vector<144x80xf32> to vector<144x80xbf16>
    %c0_50 = arith.constant 0 : index
    %c0_51 = arith.constant 0 : index
    %47 = vector.load %arg6[%c0_50, %c0_51] : memref<16x144xbf16, #tpu.memory_space<vmem>>, vector<16x144xbf16>
    %cst_52 = arith.constant dense<0.000000e+00> : vector<16x80xf32>
    %48 = tpu.matmul %47, %46, %cst_52 {dimension_numbers = #tpu.dot_dimension_numbers<[1], [0], [0], [1], [0, 0, 1, 1], [], []>} : vector<16x144xbf16>, vector<144x80xbf16>, vector<16x80xf32> -> vector<16x80xf32>
    %c0_53 = arith.constant 0 : index
    %c0_54 = arith.constant 0 : index
    %49 = vector.load %arg7[%c0_53, %c0_54] : memref<16x1xf32, #tpu.memory_space<vmem>>, vector<16x1xf32>
    %50 = vector.broadcast %49 : vector<16x1xf32> to vector<16x80xf32>
    %51 = arith.mulf %48, %50 : vector<16x80xf32>
    %c0_55 = arith.constant 0 : index
    %c0_56 = arith.constant 0 : index
    %52 = vector.load %arg8[%c0_55, %c0_56] : memref<16x1xf32, #tpu.memory_space<vmem>>, vector<16x1xf32>
    %53 = vector.broadcast %52 : vector<16x1xf32> to vector<16x80xf32>
    %54 = arith.addf %51, %53 : vector<16x80xf32>
    %c0_57 = arith.constant 0 : index
    %c0_58 = arith.constant 0 : index
    %55 = vector.load %arg9[%c0_57, %c0_58] : memref<16x8xbf16, #tpu.memory_space<vmem>>, vector<16x8xbf16>
    %c0_59 = arith.constant 0 : index
    %c0_60 = arith.constant 0 : index
    %c11_61 = arith.constant 11 : index
    %56 = vector.load %arg1[%c0_59, %c0_60, %c11_61] : memref<1x8x104xf32, #tpu.memory_space<vmem>>, vector<1x8x80xf32>
    %57 = vector.shape_cast %56 : vector<1x8x80xf32> to vector<8x80xf32>
    %58 = arith.truncf %57 : vector<8x80xf32> to vector<8x80xbf16>
    %cst_62 = arith.constant dense<0.000000e+00> : vector<16x80xf32>
    %59 = tpu.matmul %55, %58, %cst_62 {dimension_numbers = #tpu.dot_dimension_numbers<[1], [0], [0], [1], [0, 0, 1, 1], [], []>} : vector<16x8xbf16>, vector<8x80xbf16>, vector<16x80xf32> -> vector<16x80xf32>
    %c0_63 = arith.constant 0 : index
    %c0_64 = arith.constant 0 : index
    %60 = vector.load %arg10[%c0_63, %c0_64] : memref<16x1xf32, #tpu.memory_space<vmem>>, vector<16x1xf32>
    %61 = vector.broadcast %60 : vector<16x1xf32> to vector<16x80xf32>
    %62 = arith.mulf %59, %61 : vector<16x80xf32>
    %c0_65 = arith.constant 0 : index
    %c0_66 = arith.constant 0 : index
    %63 = vector.load %arg11[%c0_65, %c0_66] : memref<16x1xf32, #tpu.memory_space<vmem>>, vector<16x1xf32>
    %64 = vector.broadcast %63 : vector<16x1xf32> to vector<16x80xf32>
    %65 = arith.addf %62, %64 : vector<16x80xf32>
    %66 = arith.addf %54, %65 : vector<16x80xf32>
    %cst_67 = arith.constant 0.000000e+00 : f32
    %67 = vector.broadcast %cst_67 : f32 to vector<16x80xf32>
    %68 = arith.maximumf %66, %67 : vector<16x80xf32>
    %cst_68 = arith.constant 0.000000e+00 : f32
    %69 = vector.broadcast %cst_68 : f32 to vector<16x104xf32>
    %c0_69 = arith.constant 0 : index
    %c0_70 = arith.constant 0 : index
    %70 = vector.load %arg23[%c0_69, %c0_70] : memref<16x104xf32, #tpu.memory_space<vmem>>, vector<16x104xf32>
    tpu.vector_store %arg23[%c0_69, %c0_70], %69 {strides = array<i32>} : memref<16x104xf32, #tpu.memory_space<vmem>>, vector<16x104xf32>,
    %71 = vector.broadcast %0 : vector<1x80xf32> to vector<16x80xf32>
    %72 = arith.mulf %68, %71 : vector<16x80xf32>
    %c0_71 = arith.constant 0 : index
    %c11_72 = arith.constant 11 : index
    %73 = vector.load %arg23[%c0_71, %c11_72] : memref<16x104xf32, #tpu.memory_space<vmem>>, vector<16x80xf32>
    tpu.vector_store %arg23[%c0_71, %c11_72], %72 {strides = array<i32>} : memref<16x104xf32, #tpu.memory_space<vmem>>, vector<16x80xf32>,
    %c0_73 = arith.constant 0 : index
    %c0_74 = arith.constant 0 : index
    %74 = vector.load %arg23[%c0_73, %c0_74] : memref<16x104xf32, #tpu.memory_space<vmem>>, vector<16x80xf32>
    %c0_75 = arith.constant 0 : index
    %c1_76 = arith.constant 1 : index
    %75 = vector.load %arg23[%c0_75, %c1_76] : memref<16x104xf32, #tpu.memory_space<vmem>>, vector<16x80xf32>
    %c0_77 = arith.constant 0 : index
    %c2_78 = arith.constant 2 : index
    %76 = vector.load %arg23[%c0_77, %c2_78] : memref<16x104xf32, #tpu.memory_space<vmem>>, vector<16x80xf32>
    %c0_79 = arith.constant 0 : index
    %c10_80 = arith.constant 10 : index
    %77 = vector.load %arg23[%c0_79, %c10_80] : memref<16x104xf32, #tpu.memory_space<vmem>>, vector<16x80xf32>
    %c0_81 = arith.constant 0 : index
    %c11_82 = arith.constant 11 : index
    %78 = vector.load %arg23[%c0_81, %c11_82] : memref<16x104xf32, #tpu.memory_space<vmem>>, vector<16x80xf32>
    %c0_83 = arith.constant 0 : index
    %c12_84 = arith.constant 12 : index
    %79 = vector.load %arg23[%c0_83, %c12_84] : memref<16x104xf32, #tpu.memory_space<vmem>>, vector<16x80xf32>
    %c0_85 = arith.constant 0 : index
    %c20_86 = arith.constant 20 : index
    %80 = vector.load %arg23[%c0_85, %c20_86] : memref<16x104xf32, #tpu.memory_space<vmem>>, vector<16x80xf32>
    %c0_87 = arith.constant 0 : index
    %c21_88 = arith.constant 21 : index
    %81 = vector.load %arg23[%c0_87, %c21_88] : memref<16x104xf32, #tpu.memory_space<vmem>>, vector<16x80xf32>
    %c0_89 = arith.constant 0 : index
    %c22_90 = arith.constant 22 : index
    %82 = vector.load %arg23[%c0_89, %c22_90] : memref<16x104xf32, #tpu.memory_space<vmem>>, vector<16x80xf32>
    %83 = tpu.concatenate %74, %75, %76, %77, %78, %79, %80, %81, %82 in 0 : vector<16x80xf32>, vector<16x80xf32>, vector<16x80xf32>, vector<16x80xf32>, vector<16x80xf32>, vector<16x80xf32>, vector<16x80xf32>, vector<16x80xf32>, vector<16x80xf32> -> vector<144x80xf32>
    %84 = arith.truncf %83 : vector<144x80xf32> to vector<144x80xbf16>
    %c0_91 = arith.constant 0 : index
    %c0_92 = arith.constant 0 : index
    %85 = vector.load %arg12[%c0_91, %c0_92] : memref<16x144xbf16, #tpu.memory_space<vmem>>, vector<16x144xbf16>
    %cst_93 = arith.constant dense<0.000000e+00> : vector<16x80xf32>
    %86 = tpu.matmul %85, %84, %cst_93 {dimension_numbers = #tpu.dot_dimension_numbers<[1], [0], [0], [1], [0, 0, 1, 1], [], []>} : vector<16x144xbf16>, vector<144x80xbf16>, vector<16x80xf32> -> vector<16x80xf32>
    %c0_94 = arith.constant 0 : index
    %c0_95 = arith.constant 0 : index
    %87 = vector.load %arg13[%c0_94, %c0_95] : memref<16x1xf32, #tpu.memory_space<vmem>>, vector<16x1xf32>
    %88 = vector.broadcast %87 : vector<16x1xf32> to vector<16x80xf32>
    %89 = arith.mulf %86, %88 : vector<16x80xf32>
    %c0_96 = arith.constant 0 : index
    %c0_97 = arith.constant 0 : index
    %90 = vector.load %arg14[%c0_96, %c0_97] : memref<16x1xf32, #tpu.memory_space<vmem>>, vector<16x1xf32>
    %91 = vector.broadcast %90 : vector<16x1xf32> to vector<16x80xf32>
    %92 = arith.addf %89, %91 : vector<16x80xf32>
    %cst_98 = arith.constant 0.000000e+00 : f32
    %93 = vector.broadcast %cst_98 : f32 to vector<16x80xf32>
    %94 = arith.maximumf %92, %93 : vector<16x80xf32>
    %cst_99 = arith.constant 0.000000e+00 : f32
    %95 = vector.broadcast %cst_99 : f32 to vector<16x104xf32>
    %c0_100 = arith.constant 0 : index
    %c0_101 = arith.constant 0 : index
    %96 = vector.load %arg22[%c0_100, %c0_101] : memref<16x104xf32, #tpu.memory_space<vmem>>, vector<16x104xf32>
    tpu.vector_store %arg22[%c0_100, %c0_101], %95 {strides = array<i32>} : memref<16x104xf32, #tpu.memory_space<vmem>>, vector<16x104xf32>,
    %97 = vector.broadcast %0 : vector<1x80xf32> to vector<16x80xf32>
    %98 = arith.mulf %94, %97 : vector<16x80xf32>
    %c0_102 = arith.constant 0 : index
    %c11_103 = arith.constant 11 : index
    %99 = vector.load %arg22[%c0_102, %c11_103] : memref<16x104xf32, #tpu.memory_space<vmem>>, vector<16x80xf32>
    tpu.vector_store %arg22[%c0_102, %c11_103], %98 {strides = array<i32>} : memref<16x104xf32, #tpu.memory_space<vmem>>, vector<16x80xf32>,
    %c0_104 = arith.constant 0 : index
    %c0_105 = arith.constant 0 : index
    %100 = vector.load %arg22[%c0_104, %c0_105] : memref<16x104xf32, #tpu.memory_space<vmem>>, vector<16x80xf32>
    %c0_106 = arith.constant 0 : index
    %c1_107 = arith.constant 1 : index
    %101 = vector.load %arg22[%c0_106, %c1_107] : memref<16x104xf32, #tpu.memory_space<vmem>>, vector<16x80xf32>
    %c0_108 = arith.constant 0 : index
    %c2_109 = arith.constant 2 : index
    %102 = vector.load %arg22[%c0_108, %c2_109] : memref<16x104xf32, #tpu.memory_space<vmem>>, vector<16x80xf32>
    %c0_110 = arith.constant 0 : index
    %c10_111 = arith.constant 10 : index
    %103 = vector.load %arg22[%c0_110, %c10_111] : memref<16x104xf32, #tpu.memory_space<vmem>>, vector<16x80xf32>
    %c0_112 = arith.constant 0 : index
    %c11_113 = arith.constant 11 : index
    %104 = vector.load %arg22[%c0_112, %c11_113] : memref<16x104xf32, #tpu.memory_space<vmem>>, vector<16x80xf32>
    %c0_114 = arith.constant 0 : index
    %c12_115 = arith.constant 12 : index
    %105 = vector.load %arg22[%c0_114, %c12_115] : memref<16x104xf32, #tpu.memory_space<vmem>>, vector<16x80xf32>
    %c0_116 = arith.constant 0 : index
    %c20_117 = arith.constant 20 : index
    %106 = vector.load %arg22[%c0_116, %c20_117] : memref<16x104xf32, #tpu.memory_space<vmem>>, vector<16x80xf32>
    %c0_118 = arith.constant 0 : index
    %c21_119 = arith.constant 21 : index
    %107 = vector.load %arg22[%c0_118, %c21_119] : memref<16x104xf32, #tpu.memory_space<vmem>>, vector<16x80xf32>
    %c0_120 = arith.constant 0 : index
    %c22_121 = arith.constant 22 : index
    %108 = vector.load %arg22[%c0_120, %c22_121] : memref<16x104xf32, #tpu.memory_space<vmem>>, vector<16x80xf32>
    %109 = tpu.concatenate %100, %101, %102, %103, %104, %105, %106, %107, %108 in 0 : vector<16x80xf32>, vector<16x80xf32>, vector<16x80xf32>, vector<16x80xf32>, vector<16x80xf32>, vector<16x80xf32>, vector<16x80xf32>, vector<16x80xf32>, vector<16x80xf32> -> vector<144x80xf32>
    %110 = arith.truncf %109 : vector<144x80xf32> to vector<144x80xbf16>
    %c0_122 = arith.constant 0 : index
    %c0_123 = arith.constant 0 : index
    %111 = vector.load %arg15[%c0_122, %c0_123] : memref<16x144xbf16, #tpu.memory_space<vmem>>, vector<16x144xbf16>
    %cst_124 = arith.constant dense<0.000000e+00> : vector<16x80xf32>
    %112 = tpu.matmul %111, %110, %cst_124 {dimension_numbers = #tpu.dot_dimension_numbers<[1], [0], [0], [1], [0, 0, 1, 1], [], []>} : vector<16x144xbf16>, vector<144x80xbf16>, vector<16x80xf32> -> vector<16x80xf32>
    %c0_125 = arith.constant 0 : index
    %c0_126 = arith.constant 0 : index
    %113 = vector.load %arg16[%c0_125, %c0_126] : memref<16x1xf32, #tpu.memory_space<vmem>>, vector<16x1xf32>
    %114 = vector.broadcast %113 : vector<16x1xf32> to vector<16x80xf32>
    %115 = arith.mulf %112, %114 : vector<16x80xf32>
    %c0_127 = arith.constant 0 : index
    %c0_128 = arith.constant 0 : index
    %116 = vector.load %arg17[%c0_127, %c0_128] : memref<16x1xf32, #tpu.memory_space<vmem>>, vector<16x1xf32>
    %117 = vector.broadcast %116 : vector<16x1xf32> to vector<16x80xf32>
    %118 = arith.addf %115, %117 : vector<16x80xf32>
    %119 = arith.addf %118, %68 : vector<16x80xf32>
    %cst_129 = arith.constant 0.000000e+00 : f32
    %120 = vector.broadcast %cst_129 : f32 to vector<16x80xf32>
    %121 = arith.maximumf %119, %120 : vector<16x80xf32>
    %122 = tpu.concatenate %68, %121 in 0 : vector<16x80xf32>, vector<16x80xf32> -> vector<32x80xf32>
    %123 = arith.truncf %122 : vector<32x80xf32> to vector<32x80xbf16>
    %c0_130 = arith.constant 0 : index
    %c0_131 = arith.constant 0 : index
    %124 = vector.load %arg18[%c0_130, %c0_131] : memref<16x32xbf16, #tpu.memory_space<vmem>>, vector<16x32xbf16>
    %cst_132 = arith.constant dense<0.000000e+00> : vector<16x80xf32>
    %125 = tpu.matmul %124, %123, %cst_132 {dimension_numbers = #tpu.dot_dimension_numbers<[1], [0], [0], [1], [0, 0, 1, 1], [], []>} : vector<16x32xbf16>, vector<32x80xbf16>, vector<16x80xf32> -> vector<16x80xf32>
    %c0_133 = arith.constant 0 : index
    %c0_134 = arith.constant 0 : index
    %126 = vector.load %arg19[%c0_133, %c0_134] : memref<16x1xf32, #tpu.memory_space<vmem>>, vector<16x1xf32>
    %127 = vector.broadcast %126 : vector<16x1xf32> to vector<16x80xf32>
    %128 = arith.mulf %125, %127 : vector<16x80xf32>
    %c0_135 = arith.constant 0 : index
    %c0_136 = arith.constant 0 : index
    %129 = vector.load %arg20[%c0_135, %c0_136] : memref<16x1xf32, #tpu.memory_space<vmem>>, vector<16x1xf32>
    %130 = vector.broadcast %129 : vector<16x1xf32> to vector<16x80xf32>
    %131 = arith.addf %128, %130 : vector<16x80xf32>
    %cst_137 = arith.constant 0.000000e+00 : f32
    %132 = vector.broadcast %cst_137 : f32 to vector<16x80xf32>
    %133 = arith.maximumf %131, %132 : vector<16x80xf32>
    %cst_138 = arith.constant 0.000000e+00 : f32
    %134 = vector.broadcast %cst_138 : f32 to vector<16x104xf32>
    %c0_139 = arith.constant 0 : index
    %c0_140 = arith.constant 0 : index
    %c0_141 = arith.constant 0 : index
    %135 = vector.load %arg21[%c0_139, %c0_140, %c0_141] : memref<1x16x104xf32, #tpu.memory_space<vmem>>, vector<1x16x104xf32>
    %136 = vector.shape_cast %135 : vector<1x16x104xf32> to vector<16x104xf32>
    %137 = vector.shape_cast %134 : vector<16x104xf32> to vector<1x16x104xf32>
    tpu.vector_store %arg21[%c0_139, %c0_140, %c0_141], %137 {strides = array<i32>} : memref<1x16x104xf32, #tpu.memory_space<vmem>>, vector<1x16x104xf32>,
    %138 = vector.broadcast %0 : vector<1x80xf32> to vector<16x80xf32>
    %139 = arith.mulf %133, %138 : vector<16x80xf32>
    %c0_142 = arith.constant 0 : index
    %c0_143 = arith.constant 0 : index
    %c11_144 = arith.constant 11 : index
    %140 = vector.load %arg21[%c0_142, %c0_143, %c11_144] : memref<1x16x104xf32, #tpu.memory_space<vmem>>, vector<1x16x80xf32>
    %141 = vector.shape_cast %140 : vector<1x16x80xf32> to vector<16x80xf32>
    %142 = vector.shape_cast %139 : vector<16x80xf32> to vector<1x16x80xf32>
    tpu.vector_store %arg21[%c0_142, %c0_143, %c11_144], %142 {strides = array<i32>} : memref<1x16x104xf32, #tpu.memory_space<vmem>>, vector<1x16x80xf32>,
    return
  }
  func.func @transform_0(%arg0: i32) -> (i32, i32, i32) {
    %c0_i32 = arith.constant 0 : i32
    %c0_i32_0 = arith.constant 0 : i32
    %c0_i32_1 = arith.constant 0 : i32
    return %arg0, %c0_i32, %c0_i32_0 : i32, i32, i32
  }
  func.func @transform_1(%arg0: i32) -> (i32, i32) {
    %c0_i32 = arith.constant 0 : i32
    %c0_i32_0 = arith.constant 0 : i32
    %c0_i32_1 = arith.constant 0 : i32
    return %c0_i32, %c0_i32_0 : i32, i32
  }
  func.func @transform_2(%arg0: i32) -> (i32, i32) {
    %c0_i32 = arith.constant 0 : i32
    %c0_i32_0 = arith.constant 0 : i32
    %c0_i32_1 = arith.constant 0 : i32
    return %c0_i32, %c0_i32_0 : i32, i32
  }
  func.func @transform_3(%arg0: i32) -> (i32, i32) {
    %c0_i32 = arith.constant 0 : i32
    %c0_i32_0 = arith.constant 0 : i32
    %c0_i32_1 = arith.constant 0 : i32
    return %c0_i32, %c0_i32_0 : i32, i32
  }
  func.func @transform_4(%arg0: i32) -> (i32, i32) {
    %c0_i32 = arith.constant 0 : i32
    %c0_i32_0 = arith.constant 0 : i32
    %c0_i32_1 = arith.constant 0 : i32
    return %c0_i32, %c0_i32_0 : i32, i32
  }
  func.func @transform_5(%arg0: i32) -> (i32, i32) {
    %c0_i32 = arith.constant 0 : i32
    %c0_i32_0 = arith.constant 0 : i32
    %c0_i32_1 = arith.constant 0 : i32
    return %c0_i32, %c0_i32_0 : i32, i32
  }
  func.func @transform_6(%arg0: i32) -> (i32, i32) {
    %c0_i32 = arith.constant 0 : i32
    %c0_i32_0 = arith.constant 0 : i32
    %c0_i32_1 = arith.constant 0 : i32
    return %c0_i32, %c0_i32_0 : i32, i32
  }
  func.func @transform_7(%arg0: i32) -> (i32, i32) {
    %c0_i32 = arith.constant 0 : i32
    %c0_i32_0 = arith.constant 0 : i32
    %c0_i32_1 = arith.constant 0 : i32
    return %c0_i32, %c0_i32_0 : i32, i32
  }
  func.func @transform_8(%arg0: i32) -> (i32, i32) {
    %c0_i32 = arith.constant 0 : i32
    %c0_i32_0 = arith.constant 0 : i32
    %c0_i32_1 = arith.constant 0 : i32
    return %c0_i32, %c0_i32_0 : i32, i32
  }
  func.func @transform_9(%arg0: i32) -> (i32, i32) {
    %c0_i32 = arith.constant 0 : i32
    %c0_i32_0 = arith.constant 0 : i32
    %c0_i32_1 = arith.constant 0 : i32
    return %c0_i32, %c0_i32_0 : i32, i32
  }
  func.func @transform_10(%arg0: i32) -> (i32, i32) {
    %c0_i32 = arith.constant 0 : i32
    %c0_i32_0 = arith.constant 0 : i32
    %c0_i32_1 = arith.constant 0 : i32
    return %c0_i32, %c0_i32_0 : i32, i32
  }
  func.func @transform_11(%arg0: i32) -> (i32, i32) {
    %c0_i32 = arith.constant 0 : i32
    %c0_i32_0 = arith.constant 0 : i32
    %c0_i32_1 = arith.constant 0 : i32
    return %c0_i32, %c0_i32_0 : i32, i32
  }
  func.func @transform_12(%arg0: i32) -> (i32, i32) {
    %c0_i32 = arith.constant 0 : i32
    %c0_i32_0 = arith.constant 0 : i32
    %c0_i32_1 = arith.constant 0 : i32
    return %c0_i32, %c0_i32_0 : i32, i32
  }
  func.func @transform_13(%arg0: i32) -> (i32, i32) {
    %c0_i32 = arith.constant 0 : i32
    %c0_i32_0 = arith.constant 0 : i32
    %c0_i32_1 = arith.constant 0 : i32
    return %c0_i32, %c0_i32_0 : i32, i32
  }
  func.func @transform_14(%arg0: i32) -> (i32, i32) {
    %c0_i32 = arith.constant 0 : i32
    %c0_i32_0 = arith.constant 0 : i32
    %c0_i32_1 = arith.constant 0 : i32
    return %c0_i32, %c0_i32_0 : i32, i32
  }
  func.func @transform_15(%arg0: i32) -> (i32, i32) {
    %c0_i32 = arith.constant 0 : i32
    %c0_i32_0 = arith.constant 0 : i32
    %c0_i32_1 = arith.constant 0 : i32
    return %c0_i32, %c0_i32_0 : i32, i32
  }
  func.func @transform_16(%arg0: i32) -> (i32, i32) {
    %c0_i32 = arith.constant 0 : i32
    %c0_i32_0 = arith.constant 0 : i32
    %c0_i32_1 = arith.constant 0 : i32
    return %c0_i32, %c0_i32_0 : i32, i32
  }
  func.func @transform_17(%arg0: i32) -> (i32, i32) {
    %c0_i32 = arith.constant 0 : i32
    %c0_i32_0 = arith.constant 0 : i32
    %c0_i32_1 = arith.constant 0 : i32
    return %c0_i32, %c0_i32_0 : i32, i32
  }
  func.func @transform_18(%arg0: i32) -> (i32, i32) {
    %c0_i32 = arith.constant 0 : i32
    %c0_i32_0 = arith.constant 0 : i32
    %c0_i32_1 = arith.constant 0 : i32
    return %c0_i32, %c0_i32_0 : i32, i32
  }
  func.func @transform_19(%arg0: i32) -> (i32, i32) {
    %c0_i32 = arith.constant 0 : i32
    %c0_i32_0 = arith.constant 0 : i32
    %c0_i32_1 = arith.constant 0 : i32
    return %c0_i32, %c0_i32_0 : i32, i32
  }
  func.func @transform_20(%arg0: i32) -> (i32, i32, i32) {
    %c0_i32 = arith.constant 0 : i32
    %c0_i32_0 = arith.constant 0 : i32
    %c0_i32_1 = arith.constant 0 : i32
    return %arg0, %c0_i32, %c0_i32_0 : i32, i32, i32
  }
}

</mosaic_0001>

<llo_original>
// kernel: tpu_custom_call.1
$region0: #{tpu_custom_call.1}
  #allocation0 [shape = 'u32[]', space=smem, size = 0x4, offset = 0x4, fixed_abs, tag = 'smem constant byte address 0x4 - core index']
  #allocation1 [shape = 'u32[144,128]{1,0:T(1,128)}', space=vmem, size = 0x12000, scoped, tag = 'internal scratch']
  #allocation2 [shape = 'f32[16,104]{1,0:T(8,128)}', space=vmem, size = 0x2000, scoped, tag = 'scratch operand']
  #allocation3 [shape = 'f32[16,104]{1,0:T(8,128)}', space=vmem, size = 0x2000, scoped, tag = 'scratch operand']
  %s0 = inlined_call_operand.vmem [shape: f32[2,8,104], index: 0, kind: input, shape index: {}]
  %s1 = inlined_call_operand.vmem [shape: f32[1,80], index: 1, kind: input, shape index: {}]
  %s2 = inlined_call_operand.vmem [shape: bf16[16,72], index: 2, kind: input, shape index: {}]
  %s3 = inlined_call_operand.vmem [shape: f32[16,1], index: 3, kind: input, shape index: {}]
  %s4 = inlined_call_operand.vmem [shape: f32[16,1], index: 4, kind: input, shape index: {}]
  %s5 = inlined_call_operand.vmem [shape: bf16[16,144], index: 5, kind: input, shape index: {}]
  %s6 = inlined_call_operand.vmem [shape: f32[16,1], index: 6, kind: input, shape index: {}]
  %s7 = inlined_call_operand.vmem [shape: f32[16,1], index: 7, kind: input, shape index: {}]
  %s8 = inlined_call_operand.vmem [shape: bf16[16,8], index: 8, kind: input, shape index: {}]
  %s9 = inlined_call_operand.vmem [shape: f32[16,1], index: 9, kind: input, shape index: {}]
  %s10 = inlined_call_operand.vmem [shape: f32[16,1], index: 10, kind: input, shape index: {}]
  %s11 = inlined_call_operand.vmem [shape: bf16[16,144], index: 11, kind: input, shape index: {}]
  %s12 = inlined_call_operand.vmem [shape: f32[16,1], index: 12, kind: input, shape index: {}]
  %s13 = inlined_call_operand.vmem [shape: f32[16,1], index: 13, kind: input, shape index: {}]
  %s14 = inlined_call_operand.vmem [shape: bf16[16,144], index: 14, kind: input, shape index: {}]
  %s15 = inlined_call_operand.vmem [shape: f32[16,1], index: 15, kind: input, shape index: {}]
  %s16 = inlined_call_operand.vmem [shape: f32[16,1], index: 16, kind: input, shape index: {}]
  %s17 = inlined_call_operand.vmem [shape: bf16[16,32], index: 17, kind: input, shape index: {}]
  %s18 = inlined_call_operand.vmem [shape: f32[16,1], index: 18, kind: input, shape index: {}]
  %s19 = inlined_call_operand.vmem [shape: f32[16,1], index: 19, kind: input, shape index: {}]
  %s20 = inlined_call_operand.hbm [shape: f32[2,16,104], index: 20, kind: output, shape index: {}]
  %s21 = sld [smem:[#allocation0]]
  $region113: #{tpu_custom_call.1} parent=0
    _
  %s23 = ssub.s32 1, %s21
  %s24 = scalar_select 0, %s23, %s21
  $region1: #{tpu_custom_call.1} parent=0
    #allocation4 [shape = 'u8[16384]{0}', space=vmem, size = 0x4000, scoped, tag = 'output window, operand 0']
    #allocation5 [shape = 's32[2]{0}', space=sflag, size = 0x8, scoped, tag = 'scoped memory for tpu_custom_call.1']
    %25 = vsyncpa [#allocation5], 0
    %s26 = scalar_lea.sflag [#allocation5], 1
    %27 = vsyncpa %s26, 0
    loop: start=0, step=1, limit=4
    $region2: #{tpu_custom_call.1} parent=1 // loop_pre_header
      _
    $region3: #{tpu_custom_call.1} parent=1 // loop_header
      %s29 = sphi 0, %s33
      %p30 = scmp.ge.s32.totalorder %s29, 4
      %s39 = sphi 0, %s41
      %s42 = sphi 0, %s39
      %s43 = sphi 0, %s42
      %s59 = sphi 0, %s43
      %s63 = sphi 0, %s63
      %s65 = sphi 0, %s63
      %s66 = sphi 0, %s65
      %s80 = sphi 0, %s66
      %s84 = sphi 0, %s84
      %s86 = sphi 0, %s84
      %s87 = sphi 0, %s86
      %s101 = sphi 0, %s87
      %s105 = sphi 0, %s105
      %s107 = sphi 0, %s105
      %s108 = sphi 0, %s107
      %s122 = sphi 0, %s108
      %s126 = sphi 0, %s126
      %s128 = sphi 0, %s126
      %s129 = sphi 0, %s128
      %s143 = sphi 0, %s129
      %s147 = sphi 0, %s147
      %s149 = sphi 0, %s147
      %s150 = sphi 0, %s149
      %s164 = sphi 0, %s150
      %s168 = sphi 0, %s168
      %s170 = sphi 0, %s168
      %s171 = sphi 0, %s170
      %s185 = sphi 0, %s171
      %s189 = sphi 0, %s189
      %s191 = sphi 0, %s189
      %s192 = sphi 0, %s191
      %s206 = sphi 0, %s192
      %s210 = sphi 0, %s210
      %s212 = sphi 0, %s210
      %s213 = sphi 0, %s212
      %s227 = sphi 0, %s213
      %s231 = sphi 0, %s231
      %s233 = sphi 0, %s231
      %s234 = sphi 0, %s233
      %s248 = sphi 0, %s234
      %s252 = sphi 0, %s252
      %s254 = sphi 0, %s252
      %s255 = sphi 0, %s254
      %s269 = sphi 0, %s255
      %s273 = sphi 0, %s273
      %s275 = sphi 0, %s273
      %s276 = sphi 0, %s275
      %s290 = sphi 0, %s276
      %s294 = sphi 0, %s294
      %s296 = sphi 0, %s294
      %s297 = sphi 0, %s296
      %s311 = sphi 0, %s297
      %s315 = sphi 0, %s315
      %s317 = sphi 0, %s315
      %s318 = sphi 0, %s317
      %s332 = sphi 0, %s318
      %s336 = sphi 0, %s336
      %s338 = sphi 0, %s336
      %s339 = sphi 0, %s338
      %s353 = sphi 0, %s339
      %s357 = sphi 0, %s357
      %s359 = sphi 0, %s357
      %s360 = sphi 0, %s359
      %s374 = sphi 0, %s360
      %s378 = sphi 0, %s378
      %s380 = sphi 0, %s378
      %s381 = sphi 0, %s380
      %s395 = sphi 0, %s381
      %s399 = sphi 0, %s399
      %s401 = sphi 0, %s399
      %s402 = sphi 0, %s401
      %s416 = sphi 0, %s402
      %s420 = sphi 0, %s420
      %s422 = sphi 0, %s420
      %s423 = sphi 0, %s422
      %s437 = sphi 0, %s423
      %s441 = sphi 0, %s441
      %s443 = sphi 0, %s441
      %s444 = sphi 0, %s443
      %s458 = sphi 0, %s444
      %s464 = sphi 0, %s466
      %s467 = sphi 0, %s464
      %s468 = sphi 0, %s467
      %s484 = sphi 0, %s468
    $region4: #{tpu_custom_call.1} parent=1 // loop_header_branch
      %32 = sbr.rel (%p30) target = $region8
    $region5: #{tpu_custom_call.1} parent=1 // loop_body
      %s34 = ssub.s32 %s29, 1
      %s35 = ssub.s32 %s29, 2
      %s36 = sadd.s32 %s29, 1
      %s37 = ssub.s32 %s29, %s36
      %p38 = scmp.eq.s32.totalorder %s37, 0
      %s40 = sadd.s32 %s39, 1
      %s41 = scalar_select %p38, %s39, %s40
      %p44 = pneg %p38
      %p45 = scmp.eq.s32.totalorder %s29, 1
      %p46 = por %p44, %p45
      %p47 = scmp.ne.s32.totalorder %s39, %s42
      %p48 = scmp.eq.s32.totalorder %s29, 0
      %p49 = por %p47, %p48
      %p50 = scmp.ne.s32.totalorder %s39, %s42
      %p51 = scmp.eq.s32.totalorder %s34, 1
      %p52 = por %p50, %p51
      %p53 = scmp.ne.s32.totalorder %s42, %s43
      %p54 = scmp.eq.s32.totalorder %s34, 0
      %p55 = por %p53, %p54
      %p56 = scmp.ne.s32.totalorder %s42, %s43
      %p57 = scmp.eq.s32.totalorder %s35, 1
      %p58 = por %p56, %p57
      %p60 = scmp.ne.s32.totalorder %s43, %s59
      %p61 = scmp.eq.s32.totalorder %s35, 0
      %p62 = por %p60, %p61
      %s64 = sadd.s32 %s63, 1
      %p67 = scmp.eq.s32.totalorder %s29, 1
      %p68 = scmp.ne.s32.totalorder %s63, %s65
      %p69 = scmp.eq.s32.totalorder %s29, 0
      %p70 = por %p68, %p69
      %p71 = scmp.ne.s32.totalorder %s63, %s65
      %p72 = scmp.eq.s32.totalorder %s34, 1
      %p73 = por %p71, %p72
      %p74 = scmp.ne.s32.totalorder %s65, %s66
      %p75 = scmp.eq.s32.totalorder %s34, 0
      %p76 = por %p74, %p75
      %p77 = scmp.ne.s32.totalorder %s65, %s66
      %p78 = scmp.eq.s32.totalorder %s35, 1
      %p79 = por %p77, %p78
      %p81 = scmp.ne.s32.totalorder %s66, %s80
      %p82 = scmp.eq.s32.totalorder %s35, 0
      %p83 = por %p81, %p82
      %s85 = sadd.s32 %s84, 1
      %p88 = scmp.eq.s32.totalorder %s29, 1
      %p89 = scmp.ne.s32.totalorder %s84, %s86
      %p90 = scmp.eq.s32.totalorder %s29, 0
      %p91 = por %p89, %p90
      %p92 = scmp.ne.s32.totalorder %s84, %s86
      %p93 = scmp.eq.s32.totalorder %s34, 1
      %p94 = por %p92, %p93
      %p95 = scmp.ne.s32.totalorder %s86, %s87
      %p96 = scmp.eq.s32.totalorder %s34, 0
      %p97 = por %p95, %p96
      %p98 = scmp.ne.s32.totalorder %s86, %s87
      %p99 = scmp.eq.s32.totalorder %s35, 1
      %p100 = por %p98, %p99
      %p102 = scmp.ne.s32.totalorder %s87, %s101
      %p103 = scmp.eq.s32.totalorder %s35, 0
      %p104 = por %p102, %p103
      %s106 = sadd.s32 %s105, 1
      %p109 = scmp.eq.s32.totalorder %s29, 1
      %p110 = scmp.ne.s32.totalorder %s105, %s107
      %p111 = scmp.eq.s32.totalorder %s29, 0
      %p112 = por %p110, %p111
      %p113 = scmp.ne.s32.totalorder %s105, %s107
      %p114 = scmp.eq.s32.totalorder %s34, 1
      %p115 = por %p113, %p114
      %p116 = scmp.ne.s32.totalorder %s107, %s108
      %p117 = scmp.eq.s32.totalorder %s34, 0
      %p118 = por %p116, %p117
      %p119 = scmp.ne.s32.totalorder %s107, %s108
      %p120 = scmp.eq.s32.totalorder %s35, 1
      %p121 = por %p119, %p120
      %p123 = scmp.ne.s32.totalorder %s108, %s122
      %p124 = scmp.eq.s32.totalorder %s35, 0
      %p125 = por %p123, %p124
      %s127 = sadd.s32 %s126, 1
      %p130 = scmp.eq.s32.totalorder %s29, 1
      %p131 = scmp.ne.s32.totalorder %s126, %s128
      %p132 = scmp.eq.s32.totalorder %s29, 0
      %p133 = por %p131, %p132
      %p134 = scmp.ne.s32.totalorder %s126, %s128
      %p135 = scmp.eq.s32.totalorder %s34, 1
      %p136 = por %p134, %p135
      %p137 = scmp.ne.s32.totalorder %s128, %s129
      %p138 = scmp.eq.s32.totalorder %s34, 0
      %p139 = por %p137, %p138
      %p140 = scmp.ne.s32.totalorder %s128, %s129
      %p141 = scmp.eq.s32.totalorder %s35, 1
      %p142 = por %p140, %p141
      %p144 = scmp.ne.s32.totalorder %s129, %s143
      %p145 = scmp.eq.s32.totalorder %s35, 0
      %p146 = por %p144, %p145
      %s148 = sadd.s32 %s147, 1
      %p151 = scmp.eq.s32.totalorder %s29, 1
      %p152 = scmp.ne.s32.totalorder %s147, %s149
      %p153 = scmp.eq.s32.totalorder %s29, 0
      %p154 = por %p152, %p153
      %p155 = scmp.ne.s32.totalorder %s147, %s149
      %p156 = scmp.eq.s32.totalorder %s34, 1
      %p157 = por %p155, %p156
      %p158 = scmp.ne.s32.totalorder %s149, %s150
      %p159 = scmp.eq.s32.totalorder %s34, 0
      %p160 = por %p158, %p159
      %p161 = scmp.ne.s32.totalorder %s149, %s150
      %p162 = scmp.eq.s32.totalorder %s35, 1
      %p163 = por %p161, %p162
      %p165 = scmp.ne.s32.totalorder %s150, %s164
      %p166 = scmp.eq.s32.totalorder %s35, 0
      %p167 = por %p165, %p166
      %s169 = sadd.s32 %s168, 1
      %p172 = scmp.eq.s32.totalorder %s29, 1
      %p173 = scmp.ne.s32.totalorder %s168, %s170
      %p174 = scmp.eq.s32.totalorder %s29, 0
      %p175 = por %p173, %p174
      %p176 = scmp.ne.s32.totalorder %s168, %s170
      %p177 = scmp.eq.s32.totalorder %s34, 1
      %p178 = por %p176, %p177
      %p179 = scmp.ne.s32.totalorder %s170, %s171
      %p180 = scmp.eq.s32.totalorder %s34, 0
      %p181 = por %p179, %p180
      %p182 = scmp.ne.s32.totalorder %s170, %s171
      %p183 = scmp.eq.s32.totalorder %s35, 1
      %p184 = por %p182, %p183
      %p186 = scmp.ne.s32.totalorder %s171, %s185
      %p187 = scmp.eq.s32.totalorder %s35, 0
      %p188 = por %p186, %p187
      %s190 = sadd.s32 %s189, 1
      %p193 = scmp.eq.s32.totalorder %s29, 1
      %p194 = scmp.ne.s32.totalorder %s189, %s191
      %p195 = scmp.eq.s32.totalorder %s29, 0
      %p196 = por %p194, %p195
      %p197 = scmp.ne.s32.totalorder %s189, %s191
      %p198 = scmp.eq.s32.totalorder %s34, 1
      %p199 = por %p197, %p198
      %p200 = scmp.ne.s32.totalorder %s191, %s192
      %p201 = scmp.eq.s32.totalorder %s34, 0
      %p202 = por %p200, %p201
      %p203 = scmp.ne.s32.totalorder %s191, %s192
      %p204 = scmp.eq.s32.totalorder %s35, 1
      %p205 = por %p203, %p204
      %p207 = scmp.ne.s32.totalorder %s192, %s206
      %p208 = scmp.eq.s32.totalorder %s35, 0
      %p209 = por %p207, %p208
      %s211 = sadd.s32 %s210, 1
      %p214 = scmp.eq.s32.totalorder %s29, 1
      %p215 = scmp.ne.s32.totalorder %s210, %s212
      %p216 = scmp.eq.s32.totalorder %s29, 0
      %p217 = por %p215, %p216
      %p218 = scmp.ne.s32.totalorder %s210, %s212
      %p219 = scmp.eq.s32.totalorder %s34, 1
      %p220 = por %p218, %p219
      %p221 = scmp.ne.s32.totalorder %s212, %s213
      %p222 = scmp.eq.s32.totalorder %s34, 0
      %p223 = por %p221, %p222
      %p224 = scmp.ne.s32.totalorder %s212, %s213
      %p225 = scmp.eq.s32.totalorder %s35, 1
      %p226 = por %p224, %p225
      %p228 = scmp.ne.s32.totalorder %s213, %s227
      %p229 = scmp.eq.s32.totalorder %s35, 0
      %p230 = por %p228, %p229
      %s232 = sadd.s32 %s231, 1
      %p235 = scmp.eq.s32.totalorder %s29, 1
      %p236 = scmp.ne.s32.totalorder %s231, %s233
      %p237 = scmp.eq.s32.totalorder %s29, 0
      %p238 = por %p236, %p237
      %p239 = scmp.ne.s32.totalorder %s231, %s233
      %p240 = scmp.eq.s32.totalorder %s34, 1
      %p241 = por %p239, %p240
      %p242 = scmp.ne.s32.totalorder %s233, %s234
      %p243 = scmp.eq.s32.totalorder %s34, 0
      %p244 = por %p242, %p243
      %p245 = scmp.ne.s32.totalorder %s233, %s234
      %p246 = scmp.eq.s32.totalorder %s35, 1
      %p247 = por %p245, %p246
      %p249 = scmp.ne.s32.totalorder %s234, %s248
      %p250 = scmp.eq.s32.totalorder %s35, 0
      %p251 = por %p249, %p250
      %s253 = sadd.s32 %s252, 1
      %p256 = scmp.eq.s32.totalorder %s29, 1
      %p257 = scmp.ne.s32.totalorder %s252, %s254
      %p258 = scmp.eq.s32.totalorder %s29, 0
      %p259 = por %p257, %p258
      %p260 = scmp.ne.s32.totalorder %s252, %s254
      %p261 = scmp.eq.s32.totalorder %s34, 1
      %p262 = por %p260, %p261
      %p263 = scmp.ne.s32.totalorder %s254, %s255
      %p264 = scmp.eq.s32.totalorder %s34, 0
      %p265 = por %p263, %p264
      %p266 = scmp.ne.s32.totalorder %s254, %s255
      %p267 = scmp.eq.s32.totalorder %s35, 1
      %p268 = por %p266, %p267
      %p270 = scmp.ne.s32.totalorder %s255, %s269
      %p271 = scmp.eq.s32.totalorder %s35, 0
      %p272 = por %p270, %p271
      %s274 = sadd.s32 %s273, 1
      %p277 = scmp.eq.s32.totalorder %s29, 1
      %p278 = scmp.ne.s32.totalorder %s273, %s275
      %p279 = scmp.eq.s32.totalorder %s29, 0
      %p280 = por %p278, %p279
      %p281 = scmp.ne.s32.totalorder %s273, %s275
      %p282 = scmp.eq.s32.totalorder %s34, 1
      %p283 = por %p281, %p282
      %p284 = scmp.ne.s32.totalorder %s275, %s276
      %p285 = scmp.eq.s32.totalorder %s34, 0
      %p286 = por %p284, %p285
      %p287 = scmp.ne.s32.totalorder %s275, %s276
      %p288 = scmp.eq.s32.totalorder %s35, 1
      %p289 = por %p287, %p288
      %p291 = scmp.ne.s32.totalorder %s276, %s290
      %p292 = scmp.eq.s32.totalorder %s35, 0
      %p293 = por %p291, %p292
      %s295 = sadd.s32 %s294, 1
      %p298 = scmp.eq.s32.totalorder %s29, 1
      %p299 = scmp.ne.s32.totalorder %s294, %s296
      %p300 = scmp.eq.s32.totalorder %s29, 0
      %p301 = por %p299, %p300
      %p302 = scmp.ne.s32.totalorder %s294, %s296
      %p303 = scmp.eq.s32.totalorder %s34, 1
      %p304 = por %p302, %p303
      %p305 = scmp.ne.s32.totalorder %s296, %s297
      %p306 = scmp.eq.s32.totalorder %s34, 0
      %p307 = por %p305, %p306
      %p308 = scmp.ne.s32.totalorder %s296, %s297
      %p309 = scmp.eq.s32.totalorder %s35, 1
      %p310 = por %p308, %p309
      %p312 = scmp.ne.s32.totalorder %s297, %s311
      %p313 = scmp.eq.s32.totalorder %s35, 0
      %p314 = por %p312, %p313
      %s316 = sadd.s32 %s315, 1
      %p319 = scmp.eq.s32.totalorder %s29, 1
      %p320 = scmp.ne.s32.totalorder %s315, %s317
      %p321 = scmp.eq.s32.totalorder %s29, 0
      %p322 = por %p320, %p321
      %p323 = scmp.ne.s32.totalorder %s315, %s317
      %p324 = scmp.eq.s32.totalorder %s34, 1
      %p325 = por %p323, %p324
      %p326 = scmp.ne.s32.totalorder %s317, %s318
      %p327 = scmp.eq.s32.totalorder %s34, 0
      %p328 = por %p326, %p327
      %p329 = scmp.ne.s32.totalorder %s317, %s318
      %p330 = scmp.eq.s32.totalorder %s35, 1
      %p331 = por %p329, %p330
      %p333 = scmp.ne.s32.totalorder %s318, %s332
      %p334 = scmp.eq.s32.totalorder %s35, 0
      %p335 = por %p333, %p334
      %s337 = sadd.s32 %s336, 1
      %p340 = scmp.eq.s32.totalorder %s29, 1
      %p341 = scmp.ne.s32.totalorder %s336, %s338
      %p342 = scmp.eq.s32.totalorder %s29, 0
      %p343 = por %p341, %p342
      %p344 = scmp.ne.s32.totalorder %s336, %s338
      %p345 = scmp.eq.s32.totalorder %s34, 1
      %p346 = por %p344, %p345
      %p347 = scmp.ne.s32.totalorder %s338, %s339
      %p348 = scmp.eq.s32.totalorder %s34, 0
      %p349 = por %p347, %p348
      %p350 = scmp.ne.s32.totalorder %s338, %s339
      %p351 = scmp.eq.s32.totalorder %s35, 1
      %p352 = por %p350, %p351
      %p354 = scmp.ne.s32.totalorder %s339, %s353
      %p355 = scmp.eq.s32.totalorder %s35, 0
      %p356 = por %p354, %p355
      %s358 = sadd.s32 %s357, 1
      %p361 = scmp.eq.s32.totalorder %s29, 1
      %p362 = scmp.ne.s32.totalorder %s357, %s359
      %p363 = scmp.eq.s32.totalorder %s29, 0
      %p364 = por %p362, %p363
      %p365 = scmp.ne.s32.totalorder %s357, %s359
      %p366 = scmp.eq.s32.totalorder %s34, 1
      %p367 = por %p365, %p366
      %p368 = scmp.ne.s32.totalorder %s359, %s360
      %p369 = scmp.eq.s32.totalorder %s34, 0
      %p370 = por %p368, %p369
      %p371 = scmp.ne.s32.totalorder %s359, %s360
      %p372 = scmp.eq.s32.totalorder %s35, 1
      %p373 = por %p371, %p372
      %p375 = scmp.ne.s32.totalorder %s360, %s374
      %p376 = scmp.eq.s32.totalorder %s35, 0
      %p377 = por %p375, %p376
      %s379 = sadd.s32 %s378, 1
      %p382 = scmp.eq.s32.totalorder %s29, 1
      %p383 = scmp.ne.s32.totalorder %s378, %s380
      %p384 = scmp.eq.s32.totalorder %s29, 0
      %p385 = por %p383, %p384
      %p386 = scmp.ne.s32.totalorder %s378, %s380
      %p387 = scmp.eq.s32.totalorder %s34, 1
      %p388 = por %p386, %p387
      %p389 = scmp.ne.s32.totalorder %s380, %s381
      %p390 = scmp.eq.s32.totalorder %s34, 0
      %p391 = por %p389, %p390
      %p392 = scmp.ne.s32.totalorder %s380, %s381
      %p393 = scmp.eq.s32.totalorder %s35, 1
      %p394 = por %p392, %p393
      %p396 = scmp.ne.s32.totalorder %s381, %s395
      %p397 = scmp.eq.s32.totalorder %s35, 0
      %p398 = por %p396, %p397
      %s400 = sadd.s32 %s399, 1
      %p403 = scmp.eq.s32.totalorder %s29, 1
      %p404 = scmp.ne.s32.totalorder %s399, %s401
      %p405 = scmp.eq.s32.totalorder %s29, 0
      %p406 = por %p404, %p405
      %p407 = scmp.ne.s32.totalorder %s399, %s401
      %p408 = scmp.eq.s32.totalorder %s34, 1
      %p409 = por %p407, %p408
      %p410 = scmp.ne.s32.totalorder %s401, %s402
      %p411 = scmp.eq.s32.totalorder %s34, 0
      %p412 = por %p410, %p411
      %p413 = scmp.ne.s32.totalorder %s401, %s402
      %p414 = scmp.eq.s32.totalorder %s35, 1
      %p415 = por %p413, %p414
      %p417 = scmp.ne.s32.totalorder %s402, %s416
      %p418 = scmp.eq.s32.totalorder %s35, 0
      %p419 = por %p417, %p418
      %s421 = sadd.s32 %s420, 1
      %p424 = scmp.eq.s32.totalorder %s29, 1
      %p425 = scmp.ne.s32.totalorder %s420, %s422
      %p426 = scmp.eq.s32.totalorder %s29, 0
      %p427 = por %p425, %p426
      %p428 = scmp.ne.s32.totalorder %s420, %s422
      %p429 = scmp.eq.s32.totalorder %s34, 1
      %p430 = por %p428, %p429
      %p431 = scmp.ne.s32.totalorder %s422, %s423
      %p432 = scmp.eq.s32.totalorder %s34, 0
      %p433 = por %p431, %p432
      %p434 = scmp.ne.s32.totalorder %s422, %s423
      %p435 = scmp.eq.s32.totalorder %s35, 1
      %p436 = por %p434, %p435
      %p438 = scmp.ne.s32.totalorder %s423, %s437
      %p439 = scmp.eq.s32.totalorder %s35, 0
      %p440 = por %p438, %p439
      %s442 = sadd.s32 %s441, 1
      %p445 = scmp.eq.s32.totalorder %s29, 1
      %p446 = scmp.ne.s32.totalorder %s441, %s443
      %p447 = scmp.eq.s32.totalorder %s29, 0
      %p448 = por %p446, %p447
      %p449 = scmp.ne.s32.totalorder %s441, %s443
      %p450 = scmp.eq.s32.totalorder %s34, 1
      %p451 = por %p449, %p450
      %p452 = scmp.ne.s32.totalorder %s443, %s444
      %p453 = scmp.eq.s32.totalorder %s34, 0
      %p454 = por %p452, %p453
      %p455 = scmp.ne.s32.totalorder %s443, %s444
      %p456 = scmp.eq.s32.totalorder %s35, 1
      %p457 = por %p455, %p456
      %p459 = scmp.ne.s32.totalorder %s444, %s458
      %p460 = scmp.eq.s32.totalorder %s35, 0
      %p461 = por %p459, %p460
      %s462 = ssub.s32 %s29, %s36
      %p463 = scmp.eq.s32.totalorder %s462, 0
      %s465 = sadd.s32 %s464, 1
      %s466 = scalar_select %p463, %s464, %s465
      %p469 = pneg %p463
      %p470 = scmp.eq.s32.totalorder %s29, 1
      %p471 = por %p469, %p470
      %p472 = scmp.ne.s32.totalorder %s464, %s467
      %p473 = scmp.eq.s32.totalorder %s29, 0
      %p474 = por %p472, %p473
      %p475 = scmp.ne.s32.totalorder %s464, %s467
      %p476 = scmp.eq.s32.totalorder %s34, 1
      %p477 = por %p475, %p476
      %p478 = scmp.ne.s32.totalorder %s467, %s468
      %p479 = scmp.eq.s32.totalorder %s34, 0
      %p480 = por %p478, %p479
      %p481 = scmp.ne.s32.totalorder %s467, %s468
      %p482 = scmp.eq.s32.totalorder %s35, 1
      %p483 = por %p481, %p482
      %p485 = scmp.ne.s32.totalorder %s468, %s484
      %p486 = scmp.eq.s32.totalorder %s35, 0
      %p487 = por %p485, %p486
      %p488 = scmp.le.s32.totalorder 1, %s29
      %p489 = scmp.lt.s32.totalorder %s29, 3
      %p490 = pnand %p488, %p489
      %p491 = pneg %p490
      // Predicated region
      $region9: #{tpu_custom_call.1} parent=5 // pred_check
        _
      $region10: #{tpu_custom_call.1} parent=5 // pred_check_branch
        %493 = sbr.rel (%p490) target = $region12
      $region11: #{tpu_custom_call.1} parent=5 // pred_region
        %s494 = ssub.s32 %s29, 1
        // Predicated region
        $region13: #{tpu_custom_call.1} parent=11 // pred_check
          %p495 = pneg %p76
        $region14: #{tpu_custom_call.1} parent=11 // pred_check_branch
          %497 = sbr.rel (%p495) target = $region16
        $region15: #{tpu_custom_call.1} parent=11 // pred_region
          _
        $region16: #{tpu_custom_call.1} parent=11 // pred_fallthru
          _
        // Predicated region
        $region17: #{tpu_custom_call.1} parent=11 // pred_check
          %p498 = pneg %p97
        $region18: #{tpu_custom_call.1} parent=11 // pred_check_branch
          %500 = sbr.rel (%p498) target = $region20
        $region19: #{tpu_custom_call.1} parent=11 // pred_region
          _
        $region20: #{tpu_custom_call.1} parent=11 // pred_fallthru
          _
        // Predicated region
        $region21: #{tpu_custom_call.1} parent=11 // pred_check
          %p501 = pneg %p118
        $region22: #{tpu_custom_call.1} parent=11 // pred_check_branch
          %503 = sbr.rel (%p501) target = $region24
        $region23: #{tpu_custom_call.1} parent=11 // pred_region
          _
        $region24: #{tpu_custom_call.1} parent=11 // pred_fallthru
          _
        // Predicated region
        $region25: #{tpu_custom_call.1} parent=11 // pred_check
          %p504 = pneg %p139
        $region26: #{tpu_custom_call.1} parent=11 // pred_check_branch
          %506 = sbr.rel (%p504) target = $region28
        $region27: #{tpu_custom_call.1} parent=11 // pred_region
          _
        $region28: #{tpu_custom_call.1} parent=11 // pred_fallthru
          _
        // Predicated region
        $region29: #{tpu_custom_call.1} parent=11 // pred_check
          %p507 = pneg %p160
        $region30: #{tpu_custom_call.1} parent=11 // pred_check_branch
          %509 = sbr.rel (%p507) target = $region32
        $region31: #{tpu_custom_call.1} parent=11 // pred_region
          _
        $region32: #{tpu_custom_call.1} parent=11 // pred_fallthru
          _
        // Predicated region
        $region33: #{tpu_custom_call.1} parent=11 // pred_check
          %p510 = pneg %p181
        $region34: #{tpu_custom_call.1} parent=11 // pred_check_branch
          %512 = sbr.rel (%p510) target = $region36
        $region35: #{tpu_custom_call.1} parent=11 // pred_region
          _
        $region36: #{tpu_custom_call.1} parent=11 // pred_fallthru
          _
        // Predicated region
        $region37: #{tpu_custom_call.1} parent=11 // pred_check
          %p513 = pneg %p202
        $region38: #{tpu_custom_call.1} parent=11 // pred_check_branch
          %515 = sbr.rel (%p513) target = $region40
        $region39: #{tpu_custom_call.1} parent=11 // pred_region
          _
        $region40: #{tpu_custom_call.1} parent=11 // pred_fallthru
          _
        // Predicated region
        $region41: #{tpu_custom_call.1} parent=11 // pred_check
          %p516 = pneg %p223
        $region42: #{tpu_custom_call.1} parent=11 // pred_check_branch
          %518 = sbr.rel (%p516) target = $region44
        $region43: #{tpu_custom_call.1} parent=11 // pred_region
          _
        $region44: #{tpu_custom_call.1} parent=11 // pred_fallthru
          _
        // Predicated region
        $region45: #{tpu_custom_call.1} parent=11 // pred_check
          %p519 = pneg %p244
        $region46: #{tpu_custom_call.1} parent=11 // pred_check_branch
          %521 = sbr.rel (%p519) target = $region48
        $region47: #{tpu_custom_call.1} parent=11 // pred_region
          _
        $region48: #{tpu_custom_call.1} parent=11 // pred_fallthru
          _
        // Predicated region
        $region49: #{tpu_custom_call.1} parent=11 // pred_check
          %p522 = pneg %p265
        $region50: #{tpu_custom_call.1} parent=11 // pred_check_branch
          %524 = sbr.rel (%p522) target = $region52
        $region51: #{tpu_custom_call.1} parent=11 // pred_region
          _
        $region52: #{tpu_custom_call.1} parent=11 // pred_fallthru
          _
        // Predicated region
        $region53: #{tpu_custom_call.1} parent=11 // pred_check
          %p525 = pneg %p286
        $region54: #{tpu_custom_call.1} parent=11 // pred_check_branch
          %527 = sbr.rel (%p525) target = $region56
        $region55: #{tpu_custom_call.1} parent=11 // pred_region
          _
        $region56: #{tpu_custom_call.1} parent=11 // pred_fallthru
          _
        // Predicated region
        $region57: #{tpu_custom_call.1} parent=11 // pred_check
          %p528 = pneg %p307
        $region58: #{tpu_custom_call.1} parent=11 // pred_check_branch
          %530 = sbr.rel (%p528) target = $region60
        $region59: #{tpu_custom_call.1} parent=11 // pred_region
          _
        $region60: #{tpu_custom_call.1} parent=11 // pred_fallthru
          _
        // Predicated region
        $region61: #{tpu_custom_call.1} parent=11 // pred_check
          %p531 = pneg %p328
        $region62: #{tpu_custom_call.1} parent=11 // pred_check_branch
          %533 = sbr.rel (%p531) target = $region64
        $region63: #{tpu_custom_call.1} parent=11 // pred_region
          _
        $region64: #{tpu_custom_call.1} parent=11 // pred_fallthru
          _
        // Predicated region
        $region65: #{tpu_custom_call.1} parent=11 // pred_check
          %p534 = pneg %p349
        $region66: #{tpu_custom_call.1} parent=11 // pred_check_branch
          %536 = sbr.rel (%p534) target = $region68
        $region67: #{tpu_custom_call.1} parent=11 // pred_region
          _
        $region68: #{tpu_custom_call.1} parent=11 // pred_fallthru
          _
        // Predicated region
        $region69: #{tpu_custom_call.1} parent=11 // pred_check
          %p537 = pneg %p370
        $region70: #{tpu_custom_call.1} parent=11 // pred_check_branch
          %539 = sbr.rel (%p537) target = $region72
        $region71: #{tpu_custom_call.1} parent=11 // pred_region
          _
        $region72: #{tpu_custom_call.1} parent=11 // pred_fallthru
          _
        // Predicated region
        $region73: #{tpu_custom_call.1} parent=11 // pred_check
          %p540 = pneg %p391
        $region74: #{tpu_custom_call.1} parent=11 // pred_check_branch
          %542 = sbr.rel (%p540) target = $region76
        $region75: #{tpu_custom_call.1} parent=11 // pred_region
          _
        $region76: #{tpu_custom_call.1} parent=11 // pred_fallthru
          _
        // Predicated region
        $region77: #{tpu_custom_call.1} parent=11 // pred_check
          %p543 = pneg %p412
        $region78: #{tpu_custom_call.1} parent=11 // pred_check_branch
          %545 = sbr.rel (%p543) target = $region80
        $region79: #{tpu_custom_call.1} parent=11 // pred_region
          _
        $region80: #{tpu_custom_call.1} parent=11 // pred_fallthru
          _
        // Predicated region
        $region81: #{tpu_custom_call.1} parent=11 // pred_check
          %p546 = pneg %p433
        $region82: #{tpu_custom_call.1} parent=11 // pred_check_branch
          %548 = sbr.rel (%p546) target = $region84
        $region83: #{tpu_custom_call.1} parent=11 // pred_region
          _
        $region84: #{tpu_custom_call.1} parent=11 // pred_fallthru
          _
        // Predicated region
        $region85: #{tpu_custom_call.1} parent=11 // pred_check
          %p549 = pneg %p454
        $region86: #{tpu_custom_call.1} parent=11 // pred_check_branch
          %551 = sbr.rel (%p549) target = $region88
        $region87: #{tpu_custom_call.1} parent=11 // pred_region
          _
        $region88: #{tpu_custom_call.1} parent=11 // pred_fallthru
          _
      $region12: #{tpu_custom_call.1} parent=5 // pred_fallthru
        _
      %p552 = scmp.lt.s32.totalorder %s29, 2
      // Predicated region
      $region89: #{tpu_custom_call.1} parent=5 // pred_check
        %p553 = pneg %p552
      $region90: #{tpu_custom_call.1} parent=5 // pred_check_branch
        %555 = sbr.rel (%p553) target = $region92
      $region91: #{tpu_custom_call.1} parent=5 // pred_region
        // Predicated region
        $region93: #{tpu_custom_call.1} parent=91 // pred_check
          %p556 = pneg %p49
        $region94: #{tpu_custom_call.1} parent=91 // pred_check_branch
          %558 = sbr.rel (%p556) target = $region96
        $region95: #{tpu_custom_call.1} parent=91 // pred_region
          %p559 = scmp.lt.s32.totalorder %s29, 1
          %s560 = scalar_select %p559, %s29, 1
          %s561 = smul.addr %s560, 8
          %s562 = scalar_lea.vmem %s0, %s561
        $region96: #{tpu_custom_call.1} parent=91 // pred_fallthru
          _
      $region92: #{tpu_custom_call.1} parent=5 // pred_fallthru
        _
      %p563 = scmp.le.s32.totalorder 1, %s29
      %p564 = scmp.lt.s32.totalorder %s29, 3
      %p565 = pnand %p563, %p564
      %p566 = pneg %p565
      // Predicated region
      $region97: #{tpu_custom_call.1} parent=5 // pred_check
        _
      $region98: #{tpu_custom_call.1} parent=5 // pred_check_branch
        %568 = sbr.rel (%p565) target = $region100
      $region99: #{tpu_custom_call.1} parent=5 // pred_region
        %s569 = ssub.s32 %s29, 1
        %p570 = scmp.lt.s32.totalorder %s34, 1
        %s571 = scalar_select %p570, %s34, 1
        %s572 = smul.addr %s571, 8
        %s573 = scalar_lea.vmem %s0, %s572
        %p574 = pneg %p55
        %p575 = pneg %p52
        %p576 = pneg %p76
        %p577 = pneg %p73
        %p578 = pneg %p97
        %p579 = pneg %p94
        %p580 = pneg %p118
        %p581 = pneg %p115
        %p582 = pneg %p139
        %p583 = pneg %p136
        %p584 = pneg %p160
        %p585 = pneg %p157
        %p586 = pneg %p181
        %p587 = pneg %p178
        %p588 = pneg %p202
        %p589 = pneg %p199
        %p590 = pneg %p223
        %p591 = pneg %p220
        %p592 = pneg %p244
        %p593 = pneg %p241
        %p594 = pneg %p265
        %p595 = pneg %p262
        %p596 = pneg %p286
        %p597 = pneg %p283
        %p598 = pneg %p307
        %p599 = pneg %p304
        %p600 = pneg %p328
        %p601 = pneg %p325
        %p602 = pneg %p349
        %p603 = pneg %p346
        %p604 = pneg %p370
        %p605 = pneg %p367
        %p606 = pneg %p391
        %p607 = pneg %p388
        %p608 = pneg %p412
        %p609 = pneg %p409
        %p610 = pneg %p433
        %p611 = pneg %p430
        %p612 = pneg %p454
        %p613 = pneg %p451
        %p614 = pneg %p480
        %p615 = pneg %p477
        %s616 = sand.u32 %s467, 1
        %s617 = scalar_lea.sflag [#allocation5], %s616
        %s618 = sand.u32 %s467, 1
        %s619 = smul.addr %s618, 16
        %s620 = scalar_lea.vmem [#allocation4], %s619
        %p621 = scmp.lt.s32.totalorder %s34, 1
        %s622 = scalar_select %p621, %s34, 1
        %s623 = smul.addr %s622, 8
        %s624 = scalar_lea.vmem %s0, %s623
        %v626 = vld [vmem:[%s1] sm:$0x1]
        %v627 = vld [vmem:[%s624] sm:$0xff]
        %629 = vrot.lane.b32.xlu0 %v627, 127
        %v630 = vpop.permute.xlu0 %629
        %632 = vrot.lane.b32.xlu0 %v627, 126
        %v633 = vpop.permute.xlu0 %632
        %635 = vrot.lane.b32.xlu0 %v627, 118
        %v636 = vpop.permute.xlu0 %635
        %638 = vrot.lane.b32.xlu0 %v627, 117
        %v639 = vpop.permute.xlu0 %638
        %641 = vrot.lane.b32.xlu0 %v627, 116
        %v642 = vpop.permute.xlu0 %641
        %644 = vrot.lane.b32.xlu0 %v627, 108
        %v645 = vpop.permute.xlu0 %644
        %647 = vrot.lane.b32.xlu0 %v627, 107
        %v648 = vpop.permute.xlu0 %647
        %650 = vrot.lane.b32.xlu0 %v627, 106
        %v651 = vpop.permute.xlu0 %650
        %v653 = vpack.c.bf16 %v630, %v627
        %v654 = vpack.c.bf16 %v636, %v633
        %v655 = vpack.c.bf16 %v642, %v639
        %v656 = vpack.c.bf16 %v648, %v645
        %v657 = vpack.c.bf16 %v651, %v651
        %v658 = vld [vmem:[%s2] sm:$0xf]
        %v659 = vld [vmem:[%s2 + $0x4] sm:$0xf]
        %v662 = vunpack.c.l.b16 %v658
        %v663 = vunpack.c.l.b16 %v659
        %v664 = vpack.c.b16 %v663, %v662
        %vm665 = vcmask 588800
        %v667 = vsel %vm665, %v664, 0
        %vm669 = vcmask 1043456
        %v671 = vsel %vm669, %v657, 0
        %673 = vmatprep.subr.bf16.mxu0 0
        %674 = vmatpush1.bf16.msra.mxu0 %v653
        %675 = vmatprep.subr.bf16.mxu0 0
        %676 = vmatpush1.bf16.msra.mxu0 %v654
        %677 = vmatprep.subr.bf16.mxu0 0
        %678 = vmatpush1.bf16.msra.mxu0 %v655
        %679 = vmatprep.subr.bf16.mxu0 0
        %680 = vmatpush1.bf16.msra.mxu0 %v656
        %681 = vmatprep.subr.bf16.mxu0 0
        %682 = vmatpush1.bf16.msra.mxu0 %v671
        %683 = vmatprep.subr.bf16.mxu0 0
        %684 = vmatpush1.bf16.msra.mxu0 0
        %685 = vmatprep.subr.bf16.mxu0 0
        %686 = vmatpush1.bf16.msra.mxu0 0
        %687 = vmatprep.subr.bf16.mxu0 0
        %688 = vmatpush1.bf16.msra.mxu0 0
        %689 = vmatprep.subr.bf16.mxu0 0
        %690 = vmatpush1.bf16.msra.mxu0 0
        %691 = vmatprep.subr.bf16.mxu0 0
        %692 = vmatpush1.bf16.msra.mxu0 0
        %693 = vmatprep.subr.bf16.mxu0 0
        %694 = vmatpush1.bf16.msra.mxu0 0
        %695 = vmatprep.subr.bf16.mxu0 0
        %696 = vmatpush1.bf16.msra.mxu0 0
        %697 = vmatprep.subr.bf16.mxu0 0
        %698 = vmatpush1.bf16.msra.mxu0 0
        %699 = vmatprep.subr.bf16.mxu0 0
        %700 = vmatpush1.bf16.msra.mxu0 0
        %701 = vmatprep.subr.bf16.mxu0 0
        %702 = vmatpush1.bf16.msra.mxu0 0
        %703 = vmatprep.subr.bf16.mxu0 0
        %704 = vmatpush1.bf16.msra.mxu0 0
        %705 = vmatprep.mubr.bf16.mxu0 0
        %706 = vmatmul.mubr.bf16.gmra.mrb[0].mxu0 %v667
        %v707 = vpop.f32.mrb[0].mxu0
        %v708 = vadd.f32 0.0, %v707
        %v709 = vpop.f32.mrb[0].mxu0
        %v710 = vpop.f32.mrb[0].mxu0
        %v711 = vadd.f32 0.0, %v710
        %v712 = vpop.f32.mrb[0].mxu0
        %713 = vdwg.mxu0
        %v714 = vld [vmem:[%s3] sm:$0xff]
        %v715 = vld [vmem:[%s3 + $0x8] sm:$0xff]
        %717 = vset.pattern.permute.xlu0 0
        %718 = vperm.xlu0 %717, %v714
        %v719 = vpop.permute.xlu0 %718
        %722 = vset.pattern.permute.xlu0 0
        %723 = vperm.xlu0 %722, %v715
        %v724 = vpop.permute.xlu0 %723
        %v726 = vmul.f32 %v708, %v719
        %v727 = vmul.f32 %v711, %v724
        %v728 = vld [vmem:[%s4] sm:$0xff]
        %v729 = vld [vmem:[%s4 + $0x8] sm:$0xff]
        %731 = vset.pattern.permute.xlu0 0
        %732 = vperm.xlu0 %731, %v728
        %v733 = vpop.permute.xlu0 %732
        %736 = vset.pattern.permute.xlu0 0
        %737 = vperm.xlu0 %736, %v729
        %v738 = vpop.permute.xlu0 %737
        %v740 = vadd.f32 %v726, %v733
        %v741 = vadd.f32 %v727, %v738
        %v742 = vmax.f32 %v740, 0.0
        %v743 = vmax.f32 %v741, 0.0
        %vm744 = vcmask 850944
        %745 = vst.msk [vmem:[#allocation2] sm:$0xff] %vm744, 0.0
        %746 = vst.msk [vmem:[#allocation2 + $0x8] sm:$0xff] %vm744, 0.0
        %v748 = vlaneseq
        %v749 = vshrl.u32 %v748, 7
        %v750 = vsub.s32 0, %v749
        %v751 = vrot.slane %v626, %v750
        %v753 = vmul.f32 %v742, %v751
        %v754 = vmul.f32 %v743, %v751
        %757 = vrot.lane.b32.xlu0 %v753, 11
        %v758 = vpop.permute.xlu0 %757
        %759 = vrot.lane.b32.xlu0 %v754, 11
        %v760 = vpop.permute.xlu0 %759
        %vm763 = vcmask 744536
        %764 = vst.msk [vmem:[#allocation2] sm:$0xff] %vm763, %v758
        %765 = vst.msk [vmem:[#allocation2 + $0x8] sm:$0xff] %vm763, %v760
        %v766 = vld [vmem:[#allocation2] sm:$0xff]
        %v767 = vld [vmem:[#allocation2 + $0x8] sm:$0xff]
        %770 = vrot.lane.b32.xlu0 %v766, 127
        %v771 = vpop.permute.xlu0 %770
        %772 = vrot.lane.b32.xlu0 %v767, 127
        %v773 = vpop.permute.xlu0 %772
        %776 = vrot.lane.b32.xlu0 %v766, 126
        %v777 = vpop.permute.xlu0 %776
        %778 = vrot.lane.b32.xlu0 %v767, 126
        %v779 = vpop.permute.xlu0 %778
        %782 = vrot.lane.b32.xlu0 %v766, 118
        %v783 = vpop.permute.xlu0 %782
        %784 = vrot.lane.b32.xlu0 %v767, 118
        %v785 = vpop.permute.xlu0 %784
        %788 = vrot.lane.b32.xlu0 %v766, 117
        %v789 = vpop.permute.xlu0 %788
        %790 = vrot.lane.b32.xlu0 %v767, 117
        %v791 = vpop.permute.xlu0 %790
        %794 = vrot.lane.b32.xlu0 %v766, 116
        %v795 = vpop.permute.xlu0 %794
        %796 = vrot.lane.b32.xlu0 %v767, 116
        %v797 = vpop.permute.xlu0 %796
        %800 = vrot.lane.b32.xlu0 %v766, 108
        %v801 = vpop.permute.xlu0 %800
        %802 = vrot.lane.b32.xlu0 %v767, 108
        %v803 = vpop.permute.xlu0 %802
        %806 = vrot.lane.b32.xlu0 %v766, 107
        %v807 = vpop.permute.xlu0 %806
        %808 = vrot.lane.b32.xlu0 %v767, 107
        %v809 = vpop.permute.xlu0 %808
        %812 = vrot.lane.b32.xlu0 %v766, 106
        %v813 = vpop.permute.xlu0 %812
        %814 = vrot.lane.b32.xlu0 %v767, 106
        %v815 = vpop.permute.xlu0 %814
        %v818 = vpack.c.bf16 %v767, %v766
        %v819 = vpack.c.bf16 %v773, %v771
        %v820 = vpack.c.bf16 %v779, %v777
        %v821 = vpack.c.bf16 %v785, %v783
        %v822 = vpack.c.bf16 %v791, %v789
        %v823 = vpack.c.bf16 %v797, %v795
        %v824 = vpack.c.bf16 %v803, %v801
        %v825 = vpack.c.bf16 %v809, %v807
        %v826 = vpack.c.bf16 %v815, %v813
        %v827 = vld [vmem:[%s5] sm:$0xff]
        %v828 = vld [vmem:[%s5 + $0x8] sm:$0xff]
        %v831 = vunpack.c.l.b16 %v827
        %v832 = vunpack.c.h.b16 %v827
        %v833 = vunpack.c.l.b16 %v828
        %v834 = vunpack.c.h.b16 %v828
        %v835 = vpack.c.b16 %v833, %v831
        %v836 = vpack.c.b16 %v834, %v832
        %vm838 = vcmask 130048
        %v840 = vsel %vm838, %v836, 0
        %842 = vmatprep.subr.bf16.mxu0 0
        %843 = vmatpush1.bf16.msra.mxu0 %v818
        %844 = vmatprep.subr.bf16.mxu0 0
        %845 = vmatpush1.bf16.msra.mxu0 %v819
        %846 = vmatprep.subr.bf16.mxu0 0
        %847 = vmatpush1.bf16.msra.mxu0 %v820
        %848 = vmatprep.subr.bf16.mxu0 0
        %849 = vmatpush1.bf16.msra.mxu0 %v821
        %850 = vmatprep.subr.bf16.mxu0 0
        %851 = vmatpush1.bf16.msra.mxu0 %v822
        %852 = vmatprep.subr.bf16.mxu0 0
        %853 = vmatpush1.bf16.msra.mxu0 %v823
        %854 = vmatprep.subr.bf16.mxu0 0
        %855 = vmatpush1.bf16.msra.mxu0 %v824
        %856 = vmatprep.subr.bf16.mxu0 0
        %857 = vmatpush1.bf16.msra.mxu0 %v825
        %858 = vmatprep.subr.bf16.mxu0 0
        %859 = vmatpush1.bf16.msra.mxu0 %v826
        %860 = vmatprep.subr.bf16.mxu0 0
        %861 = vmatpush1.bf16.msra.mxu0 0
        %862 = vmatprep.subr.bf16.mxu0 0
        %863 = vmatpush1.bf16.msra.mxu0 0
        %864 = vmatprep.subr.bf16.mxu0 0
        %865 = vmatpush1.bf16.msra.mxu0 0
        %866 = vmatprep.subr.bf16.mxu0 0
        %867 = vmatpush1.bf16.msra.mxu0 0
        %868 = vmatprep.subr.bf16.mxu0 0
        %869 = vmatpush1.bf16.msra.mxu0 0
        %870 = vmatprep.subr.bf16.mxu0 0
        %871 = vmatpush1.bf16.msra.mxu0 0
        %872 = vmatprep.subr.bf16.mxu0 0
        %873 = vmatpush1.bf16.msra.mxu0 0
        %874 = vmatprep.mubr.bf16.mxu0 %v840
        %875 = vmatmul.mubr.bf16.gmra.mrb[0].mxu0 %v835
        %v876 = vpop.f32.mrb[0].mxu0
        %v877 = vadd.f32 0.0, %v876
        %v878 = vpop.f32.mrb[0].mxu0
        %v879 = vpop.f32.mrb[0].mxu0
        %v880 = vadd.f32 0.0, %v879
        %v881 = vpop.f32.mrb[0].mxu0
        %882 = vdwg.mxu0
        %v883 = vld [vmem:[%s6] sm:$0xff]
        %v884 = vld [vmem:[%s6 + $0x8] sm:$0xff]
        %886 = vset.pattern.permute.xlu0 0
        %887 = vperm.xlu0 %886, %v883
        %v888 = vpop.permute.xlu0 %887
        %891 = vset.pattern.permute.xlu0 0
        %892 = vperm.xlu0 %891, %v884
        %v893 = vpop.permute.xlu0 %892
        %v895 = vmul.f32 %v877, %v888
        %v896 = vmul.f32 %v880, %v893
        %v897 = vld [vmem:[%s7] sm:$0xff]
        %v898 = vld [vmem:[%s7 + $0x8] sm:$0xff]
        %900 = vset.pattern.permute.xlu0 0
        %901 = vperm.xlu0 %900, %v897
        %v902 = vpop.permute.xlu0 %901
        %905 = vset.pattern.permute.xlu0 0
        %906 = vperm.xlu0 %905, %v898
        %v907 = vpop.permute.xlu0 %906
        %v909 = vadd.f32 %v895, %v902
        %v910 = vadd.f32 %v896, %v907
        %v911 = vld [vmem:[%s8] sm:$0xf]
        %v912 = vld [vmem:[%s8 + $0x4] sm:$0xf]
        %v913 = vld [vmem:[%s624] sm:$0xff]
        %v914 = vpack.c.bf16 %v913, %v913
        %v917 = vunpack.c.l.b16 %v911
        %v918 = vunpack.c.l.b16 %v912
        %v919 = vpack.c.b16 %v918, %v917
        %921 = vrot.lane.b32.xlu0 %v914, 117
        %v922 = vpop.permute.xlu0 %921
        %vm923 = vcmask 64512
        %v925 = vsel %vm923, %v919, 0
        %v928 = vsel %vm669, %v922, 0
        %930 = vmatprep.subr.bf16.mxu0 0
        %931 = vmatpush1.bf16.msra.mxu0 %v928
        %932 = vmatprep.subr.bf16.mxu0 0
        %933 = vmatpush1.bf16.msra.mxu0 0
        %934 = vmatprep.subr.bf16.mxu0 0
        %935 = vmatpush1.bf16.msra.mxu0 0
        %936 = vmatprep.subr.bf16.mxu0 0
        %937 = vmatpush1.bf16.msra.mxu0 0
        %938 = vmatprep.subr.bf16.mxu0 0
        %939 = vmatpush1.bf16.msra.mxu0 0
        %940 = vmatprep.subr.bf16.mxu0 0
        %941 = vmatpush1.bf16.msra.mxu0 0
        %942 = vmatprep.subr.bf16.mxu0 0
        %943 = vmatpush1.bf16.msra.mxu0 0
        %944 = vmatprep.subr.bf16.mxu0 0
        %945 = vmatpush1.bf16.msra.mxu0 0
        %946 = vmatprep.subr.bf16.mxu0 0
        %947 = vmatpush1.bf16.msra.mxu0 0
        %948 = vmatprep.subr.bf16.mxu0 0
        %949 = vmatpush1.bf16.msra.mxu0 0
        %950 = vmatprep.subr.bf16.mxu0 0
        %951 = vmatpush1.bf16.msra.mxu0 0
        %952 = vmatprep.subr.bf16.mxu0 0
        %953 = vmatpush1.bf16.msra.mxu0 0
        %954 = vmatprep.subr.bf16.mxu0 0
        %955 = vmatpush1.bf16.msra.mxu0 0
        %956 = vmatprep.subr.bf16.mxu0 0
        %957 = vmatpush1.bf16.msra.mxu0 0
        %958 = vmatprep.subr.bf16.mxu0 0
        %959 = vmatpush1.bf16.msra.mxu0 0
        %960 = vmatprep.subr.bf16.mxu0 0
        %961 = vmatpush1.bf16.msra.mxu0 0
        %962 = vmatprep.mubr.bf16.mxu0 0
        %963 = vmatmul.mubr.bf16.gmra.mrb[0].mxu0 %v925
        %v964 = vpop.f32.mrb[0].mxu0
        %v965 = vadd.f32 0.0, %v964
        %v966 = vpop.f32.mrb[0].mxu0
        %v967 = vpop.f32.mrb[0].mxu0
        %v968 = vadd.f32 0.0, %v967
        %v969 = vpop.f32.mrb[0].mxu0
        %970 = vdwg.mxu0
        %v971 = vld [vmem:[%s9] sm:$0xff]
        %v972 = vld [vmem:[%s9 + $0x8] sm:$0xff]
        %974 = vset.pattern.permute.xlu0 0
        %975 = vperm.xlu0 %974, %v971
        %v976 = vpop.permute.xlu0 %975
        %979 = vset.pattern.permute.xlu0 0
        %980 = vperm.xlu0 %979, %v972
        %v981 = vpop.permute.xlu0 %980
        %v983 = vmul.f32 %v965, %v976
        %v984 = vmul.f32 %v968, %v981
        %v985 = vld [vmem:[%s10] sm:$0xff]
        %v986 = vld [vmem:[%s10 + $0x8] sm:$0xff]
        %988 = vset.pattern.permute.xlu0 0
        %989 = vperm.xlu0 %988, %v985
        %v990 = vpop.permute.xlu0 %989
        %993 = vset.pattern.permute.xlu0 0
        %994 = vperm.xlu0 %993, %v986
        %v995 = vpop.permute.xlu0 %994
        %v997 = vadd.f32 %v983, %v990
        %v998 = vadd.f32 %v984, %v995
        %v999 = vadd.f32 %v909, %v997
        %v1000 = vadd.f32 %v910, %v998
        %v1001 = vmax.f32 %v999, 0.0
        %v1002 = vmax.f32 %v1000, 0.0
        %1003 = vst.msk [vmem:[#allocation3] sm:$0xff] %vm744, 0.0
        %1004 = vst.msk [vmem:[#allocation3 + $0x8] sm:$0xff] %vm744, 0.0
        %v1005 = vmul.f32 %v1001, %v751
        %v1006 = vmul.f32 %v1002, %v751
        %1009 = vrot.lane.b32.xlu0 %v1005, 11
        %v1010 = vpop.permute.xlu0 %1009
        %1011 = vrot.lane.b32.xlu0 %v1006, 11
        %v1012 = vpop.permute.xlu0 %1011
        %1015 = vst.msk [vmem:[#allocation3] sm:$0xff] %vm763, %v1010
        %1016 = vst.msk [vmem:[#allocation3 + $0x8] sm:$0xff] %vm763, %v1012
        %v1017 = vld [vmem:[#allocation3] sm:$0xff]
        %v1018 = vld [vmem:[#allocation3 + $0x8] sm:$0xff]
        %1021 = vrot.lane.b32.xlu0 %v1017, 127
        %v1022 = vpop.permute.xlu0 %1021
        %1023 = vrot.lane.b32.xlu0 %v1018, 127
        %v1024 = vpop.permute.xlu0 %1023
        %1027 = vrot.lane.b32.xlu0 %v1017, 126
        %v1028 = vpop.permute.xlu0 %1027
        %1029 = vrot.lane.b32.xlu0 %v1018, 126
        %v1030 = vpop.permute.xlu0 %1029
        %1033 = vrot.lane.b32.xlu0 %v1017, 118
        %v1034 = vpop.permute.xlu0 %1033
        %1035 = vrot.lane.b32.xlu0 %v1018, 118
        %v1036 = vpop.permute.xlu0 %1035
        %1039 = vrot.lane.b32.xlu0 %v1017, 117
        %v1040 = vpop.permute.xlu0 %1039
        %1041 = vrot.lane.b32.xlu0 %v1018, 117
        %v1042 = vpop.permute.xlu0 %1041
        %1045 = vrot.lane.b32.xlu0 %v1017, 116
        %v1046 = vpop.permute.xlu0 %1045
        %1047 = vrot.lane.b32.xlu0 %v1018, 116
        %v1048 = vpop.permute.xlu0 %1047
        %1051 = vrot.lane.b32.xlu0 %v1017, 108
        %v1052 = vpop.permute.xlu0 %1051
        %1053 = vrot.lane.b32.xlu0 %v1018, 108
        %v1054 = vpop.permute.xlu0 %1053
        %1057 = vrot.lane.b32.xlu0 %v1017, 107
        %v1058 = vpop.permute.xlu0 %1057
        %1059 = vrot.lane.b32.xlu0 %v1018, 107
        %v1060 = vpop.permute.xlu0 %1059
        %1063 = vrot.lane.b32.xlu0 %v1017, 106
        %v1064 = vpop.permute.xlu0 %1063
        %1065 = vrot.lane.b32.xlu0 %v1018, 106
        %v1066 = vpop.permute.xlu0 %1065
        %v1069 = vpack.c.bf16 %v1018, %v1017
        %v1070 = vpack.c.bf16 %v1024, %v1022
        %v1071 = vpack.c.bf16 %v1030, %v1028
        %v1072 = vpack.c.bf16 %v1036, %v1034
        %v1073 = vpack.c.bf16 %v1042, %v1040
        %v1074 = vpack.c.bf16 %v1048, %v1046
        %v1075 = vpack.c.bf16 %v1054, %v1052
        %v1076 = vpack.c.bf16 %v1060, %v1058
        %v1077 = vpack.c.bf16 %v1066, %v1064
        %v1078 = vld [vmem:[%s11] sm:$0xff]
        %v1079 = vld [vmem:[%s11 + $0x8] sm:$0xff]
        %v1082 = vunpack.c.l.b16 %v1078
        %v1083 = vunpack.c.h.b16 %v1078
        %v1084 = vunpack.c.l.b16 %v1079
        %v1085 = vunpack.c.h.b16 %v1079
        %v1086 = vpack.c.b16 %v1084, %v1082
        %v1087 = vpack.c.b16 %v1085, %v1083
        %v1090 = vsel %vm838, %v1087, 0
        %1092 = vmatprep.subr.bf16.mxu0 0
        %1093 = vmatpush1.bf16.msra.mxu0 %v1069
        %1094 = vmatprep.subr.bf16.mxu0 0
        %1095 = vmatpush1.bf16.msra.mxu0 %v1070
        %1096 = vmatprep.subr.bf16.mxu0 0
        %1097 = vmatpush1.bf16.msra.mxu0 %v1071
        %1098 = vmatprep.subr.bf16.mxu0 0
        %1099 = vmatpush1.bf16.msra.mxu0 %v1072
        %1100 = vmatprep.subr.bf16.mxu0 0
        %1101 = vmatpush1.bf16.msra.mxu0 %v1073
        %1102 = vmatprep.subr.bf16.mxu0 0
        %1103 = vmatpush1.bf16.msra.mxu0 %v1074
        %1104 = vmatprep.subr.bf16.mxu0 0
        %1105 = vmatpush1.bf16.msra.mxu0 %v1075
        %1106 = vmatprep.subr.bf16.mxu0 0
        %1107 = vmatpush1.bf16.msra.mxu0 %v1076
        %1108 = vmatprep.subr.bf16.mxu0 0
        %1109 = vmatpush1.bf16.msra.mxu0 %v1077
        %1110 = vmatprep.subr.bf16.mxu0 0
        %1111 = vmatpush1.bf16.msra.mxu0 0
        %1112 = vmatprep.subr.bf16.mxu0 0
        %1113 = vmatpush1.bf16.msra.mxu0 0
        %1114 = vmatprep.subr.bf16.mxu0 0
        %1115 = vmatpush1.bf16.msra.mxu0 0
        %1116 = vmatprep.subr.bf16.mxu0 0
        %1117 = vmatpush1.bf16.msra.mxu0 0
        %1118 = vmatprep.subr.bf16.mxu0 0
        %1119 = vmatpush1.bf16.msra.mxu0 0
        %1120 = vmatprep.subr.bf16.mxu0 0
        %1121 = vmatpush1.bf16.msra.mxu0 0
        %1122 = vmatprep.subr.bf16.mxu0 0
        %1123 = vmatpush1.bf16.msra.mxu0 0
        %1124 = vmatprep.mubr.bf16.mxu0 %v1090
        %1125 = vmatmul.mubr.bf16.gmra.mrb[0].mxu0 %v1086
        %v1126 = vpop.f32.mrb[0].mxu0
        %v1127 = vadd.f32 0.0, %v1126
        %v1128 = vpop.f32.mrb[0].mxu0
        %v1129 = vpop.f32.mrb[0].mxu0
        %v1130 = vadd.f32 0.0, %v1129
        %v1131 = vpop.f32.mrb[0].mxu0
        %1132 = vdwg.mxu0
        %v1133 = vld [vmem:[%s12] sm:$0xff]
        %v1134 = vld [vmem:[%s12 + $0x8] sm:$0xff]
        %1136 = vset.pattern.permute.xlu0 0
        %1137 = vperm.xlu0 %1136, %v1133
        %v1138 = vpop.permute.xlu0 %1137
        %1141 = vset.pattern.permute.xlu0 0
        %1142 = vperm.xlu0 %1141, %v1134
        %v1143 = vpop.permute.xlu0 %1142
        %v1145 = vmul.f32 %v1127, %v1138
        %v1146 = vmul.f32 %v1130, %v1143
        %v1147 = vld [vmem:[%s13] sm:$0xff]
        %v1148 = vld [vmem:[%s13 + $0x8] sm:$0xff]
        %1150 = vset.pattern.permute.xlu0 0
        %1151 = vperm.xlu0 %1150, %v1147
        %v1152 = vpop.permute.xlu0 %1151
        %1155 = vset.pattern.permute.xlu0 0
        %1156 = vperm.xlu0 %1155, %v1148
        %v1157 = vpop.permute.xlu0 %1156
        %v1159 = vadd.f32 %v1145, %v1152
        %v1160 = vadd.f32 %v1146, %v1157
        %v1161 = vmax.f32 %v1159, 0.0
        %v1162 = vmax.f32 %v1160, 0.0
        %1163 = vst.msk [vmem:[#allocation2] sm:$0xff] %vm744, 0.0
        %1164 = vst.msk [vmem:[#allocation2 + $0x8] sm:$0xff] %vm744, 0.0
        %v1165 = vmul.f32 %v1161, %v751
        %v1166 = vmul.f32 %v1162, %v751
        %1169 = vrot.lane.b32.xlu0 %v1165, 11
        %v1170 = vpop.permute.xlu0 %1169
        %1171 = vrot.lane.b32.xlu0 %v1166, 11
        %v1172 = vpop.permute.xlu0 %1171
        %1175 = vst.msk [vmem:[#allocation2] sm:$0xff] %vm763, %v1170
        %1176 = vst.msk [vmem:[#allocation2 + $0x8] sm:$0xff] %vm763, %v1172
        %v1177 = vld [vmem:[#allocation2] sm:$0xff]
        %v1178 = vld [vmem:[#allocation2 + $0x8] sm:$0xff]
        %1181 = vrot.lane.b32.xlu0 %v1177, 127
        %v1182 = vpop.permute.xlu0 %1181
        %1183 = vrot.lane.b32.xlu0 %v1178, 127
        %v1184 = vpop.permute.xlu0 %1183
        %1187 = vrot.lane.b32.xlu0 %v1177, 126
        %v1188 = vpop.permute.xlu0 %1187
        %1189 = vrot.lane.b32.xlu0 %v1178, 126
        %v1190 = vpop.permute.xlu0 %1189
        %1193 = vrot.lane.b32.xlu0 %v1177, 118
        %v1194 = vpop.permute.xlu0 %1193
        %1195 = vrot.lane.b32.xlu0 %v1178, 118
        %v1196 = vpop.permute.xlu0 %1195
        %1199 = vrot.lane.b32.xlu0 %v1177, 117
        %v1200 = vpop.permute.xlu0 %1199
        %1201 = vrot.lane.b32.xlu0 %v1178, 117
        %v1202 = vpop.permute.xlu0 %1201
        %1205 = vrot.lane.b32.xlu0 %v1177, 116
        %v1206 = vpop.permute.xlu0 %1205
        %1207 = vrot.lane.b32.xlu0 %v1178, 116
        %v1208 = vpop.permute.xlu0 %1207
        %1211 = vrot.lane.b32.xlu0 %v1177, 108
        %v1212 = vpop.permute.xlu0 %1211
        %1213 = vrot.lane.b32.xlu0 %v1178, 108
        %v1214 = vpop.permute.xlu0 %1213
        %1217 = vrot.lane.b32.xlu0 %v1177, 107
        %v1218 = vpop.permute.xlu0 %1217
        %1219 = vrot.lane.b32.xlu0 %v1178, 107
        %v1220 = vpop.permute.xlu0 %1219
        %1223 = vrot.lane.b32.xlu0 %v1177, 106
        %v1224 = vpop.permute.xlu0 %1223
        %1225 = vrot.lane.b32.xlu0 %v1178, 106
        %v1226 = vpop.permute.xlu0 %1225
        %v1229 = vpack.c.bf16 %v1178, %v1177
        %v1230 = vpack.c.bf16 %v1184, %v1182
        %v1231 = vpack.c.bf16 %v1190, %v1188
        %v1232 = vpack.c.bf16 %v1196, %v1194
        %v1233 = vpack.c.bf16 %v1202, %v1200
        %v1234 = vpack.c.bf16 %v1208, %v1206
        %v1235 = vpack.c.bf16 %v1214, %v1212
        %v1236 = vpack.c.bf16 %v1220, %v1218
        %v1237 = vpack.c.bf16 %v1226, %v1224
        %v1238 = vld [vmem:[%s14] sm:$0xff]
        %v1239 = vld [vmem:[%s14 + $0x8] sm:$0xff]
        %v1242 = vunpack.c.l.b16 %v1238
        %v1243 = vunpack.c.h.b16 %v1238
        %v1244 = vunpack.c.l.b16 %v1239
        %v1245 = vunpack.c.h.b16 %v1239
        %v1246 = vpack.c.b16 %v1244, %v1242
        %v1247 = vpack.c.b16 %v1245, %v1243
        %v1250 = vsel %vm838, %v1247, 0
        %1252 = vmatprep.subr.bf16.mxu0 0
        %1253 = vmatpush1.bf16.msra.mxu0 %v1229
        %1254 = vmatprep.subr.bf16.mxu0 0
        %1255 = vmatpush1.bf16.msra.mxu0 %v1230
        %1256 = vmatprep.subr.bf16.mxu0 0
        %1257 = vmatpush1.bf16.msra.mxu0 %v1231
        %1258 = vmatprep.subr.bf16.mxu0 0
        %1259 = vmatpush1.bf16.msra.mxu0 %v1232
        %1260 = vmatprep.subr.bf16.mxu0 0
        %1261 = vmatpush1.bf16.msra.mxu0 %v1233
        %1262 = vmatprep.subr.bf16.mxu0 0
        %1263 = vmatpush1.bf16.msra.mxu0 %v1234
        %1264 = vmatprep.subr.bf16.mxu0 0
        %1265 = vmatpush1.bf16.msra.mxu0 %v1235
        %1266 = vmatprep.subr.bf16.mxu0 0
        %1267 = vmatpush1.bf16.msra.mxu0 %v1236
        %1268 = vmatprep.subr.bf16.mxu0 0
        %1269 = vmatpush1.bf16.msra.mxu0 %v1237
        %1270 = vmatprep.subr.bf16.mxu0 0
        %1271 = vmatpush1.bf16.msra.mxu0 0
        %1272 = vmatprep.subr.bf16.mxu0 0
        %1273 = vmatpush1.bf16.msra.mxu0 0
        %1274 = vmatprep.subr.bf16.mxu0 0
        %1275 = vmatpush1.bf16.msra.mxu0 0
        %1276 = vmatprep.subr.bf16.mxu0 0
        %1277 = vmatpush1.bf16.msra.mxu0 0
        %1278 = vmatprep.subr.bf16.mxu0 0
        %1279 = vmatpush1.bf16.msra.mxu0 0
        %1280 = vmatprep.subr.bf16.mxu0 0
        %1281 = vmatpush1.bf16.msra.mxu0 0
        %1282 = vmatprep.subr.bf16.mxu0 0
        %1283 = vmatpush1.bf16.msra.mxu0 0
        %1284 = vmatprep.mubr.bf16.mxu0 %v1250
        %1285 = vmatmul.mubr.bf16.gmra.mrb[0].mxu0 %v1246
        %v1286 = vpop.f32.mrb[0].mxu0
        %v1287 = vadd.f32 0.0, %v1286
        %v1288 = vpop.f32.mrb[0].mxu0
        %v1289 = vpop.f32.mrb[0].mxu0
        %v1290 = vadd.f32 0.0, %v1289
        %v1291 = vpop.f32.mrb[0].mxu0
        %1292 = vdwg.mxu0
        %v1293 = vld [vmem:[%s15] sm:$0xff]
        %v1294 = vld [vmem:[%s15 + $0x8] sm:$0xff]
        %1296 = vset.pattern.permute.xlu0 0
        %1297 = vperm.xlu0 %1296, %v1293
        %v1298 = vpop.permute.xlu0 %1297
        %1301 = vset.pattern.permute.xlu0 0
        %1302 = vperm.xlu0 %1301, %v1294
        %v1303 = vpop.permute.xlu0 %1302
        %v1305 = vmul.f32 %v1287, %v1298
        %v1306 = vmul.f32 %v1290, %v1303
        %v1307 = vld [vmem:[%s16] sm:$0xff]
        %v1308 = vld [vmem:[%s16 + $0x8] sm:$0xff]
        %1310 = vset.pattern.permute.xlu0 0
        %1311 = vperm.xlu0 %1310, %v1307
        %v1312 = vpop.permute.xlu0 %1311
        %1315 = vset.pattern.permute.xlu0 0
        %1316 = vperm.xlu0 %1315, %v1308
        %v1317 = vpop.permute.xlu0 %1316
        %v1319 = vadd.f32 %v1305, %v1312
        %v1320 = vadd.f32 %v1306, %v1317
        %v1321 = vadd.f32 %v1319, %v1001
        %v1322 = vadd.f32 %v1320, %v1002
        %v1323 = vmax.f32 %v1321, 0.0
        %v1324 = vmax.f32 %v1322, 0.0
        %v1325 = vpack.c.bf16 %v1002, %v1001
        %v1326 = vpack.c.bf16 %v1324, %v1323
        %v1327 = vld [vmem:[%s17] sm:$0xf]
        %v1328 = vld [vmem:[%s17 + $0x4] sm:$0xf]
        %v1331 = vunpack.c.l.b16 %v1327
        %v1332 = vunpack.c.l.b16 %v1328
        %v1333 = vpack.c.b16 %v1332, %v1331
        %vm1334 = vcmask 261120
        %v1336 = vsel %vm1334, %v1333, 0
        %1338 = vmatprep.subr.bf16.mxu0 0
        %1339 = vmatpush1.bf16.msra.mxu0 %v1325
        %1340 = vmatprep.subr.bf16.mxu0 0
        %1341 = vmatpush1.bf16.msra.mxu0 %v1326
        %1342 = vmatprep.subr.bf16.mxu0 0
        %1343 = vmatpush1.bf16.msra.mxu0 0
        %1344 = vmatprep.subr.bf16.mxu0 0
        %1345 = vmatpush1.bf16.msra.mxu0 0
        %1346 = vmatprep.subr.bf16.mxu0 0
        %1347 = vmatpush1.bf16.msra.mxu0 0
        %1348 = vmatprep.subr.bf16.mxu0 0
        %1349 = vmatpush1.bf16.msra.mxu0 0
        %1350 = vmatprep.subr.bf16.mxu0 0
        %1351 = vmatpush1.bf16.msra.mxu0 0
        %1352 = vmatprep.subr.bf16.mxu0 0
        %1353 = vmatpush1.bf16.msra.mxu0 0
        %1354 = vmatprep.subr.bf16.mxu0 0
        %1355 = vmatpush1.bf16.msra.mxu0 0
        %1356 = vmatprep.subr.bf16.mxu0 0
        %1357 = vmatpush1.bf16.msra.mxu0 0
        %1358 = vmatprep.subr.bf16.mxu0 0
        %1359 = vmatpush1.bf16.msra.mxu0 0
        %1360 = vmatprep.subr.bf16.mxu0 0
        %1361 = vmatpush1.bf16.msra.mxu0 0
        %1362 = vmatprep.subr.bf16.mxu0 0
        %1363 = vmatpush1.bf16.msra.mxu0 0
        %1364 = vmatprep.subr.bf16.mxu0 0
        %1365 = vmatpush1.bf16.msra.mxu0 0
        %1366 = vmatprep.subr.bf16.mxu0 0
        %1367 = vmatpush1.bf16.msra.mxu0 0
        %1368 = vmatprep.subr.bf16.mxu0 0
        %1369 = vmatpush1.bf16.msra.mxu0 0
        %1370 = vmatprep.mubr.bf16.mxu0 0
        %1371 = vmatmul.mubr.bf16.gmra.mrb[0].mxu0 %v1336
        %v1372 = vpop.f32.mrb[0].mxu0
        %v1373 = vadd.f32 0.0, %v1372
        %v1374 = vpop.f32.mrb[0].mxu0
        %v1375 = vpop.f32.mrb[0].mxu0
        %v1376 = vadd.f32 0.0, %v1375
        %v1377 = vpop.f32.mrb[0].mxu0
        %1378 = vdwg.mxu0
        %v1379 = vld [vmem:[%s18] sm:$0xff]
        %v1380 = vld [vmem:[%s18 + $0x8] sm:$0xff]
        %1382 = vset.pattern.permute.xlu0 0
        %1383 = vperm.xlu0 %1382, %v1379
        %v1384 = vpop.permute.xlu0 %1383
        %1387 = vset.pattern.permute.xlu0 0
        %1388 = vperm.xlu0 %1387, %v1380
        %v1389 = vpop.permute.xlu0 %1388
        %v1391 = vmul.f32 %v1373, %v1384
        %v1392 = vmul.f32 %v1376, %v1389
        %v1393 = vld [vmem:[%s19] sm:$0xff]
        %v1394 = vld [vmem:[%s19 + $0x8] sm:$0xff]
        %1396 = vset.pattern.permute.xlu0 0
        %1397 = vperm.xlu0 %1396, %v1393
        %v1398 = vpop.permute.xlu0 %1397
        %1401 = vset.pattern.permute.xlu0 0
        %1402 = vperm.xlu0 %1401, %v1394
        %v1403 = vpop.permute.xlu0 %1402
        %v1405 = vadd.f32 %v1391, %v1398
        %v1406 = vadd.f32 %v1392, %v1403
        %v1407 = vmax.f32 %v1405, 0.0
        %v1408 = vmax.f32 %v1406, 0.0
        %1409 = vst.msk [vmem:[%s620] sm:$0xff] %vm744, 0.0
        %1410 = vst.msk [vmem:[%s620 + $0x8] sm:$0xff] %vm744, 0.0
        %v1411 = vmul.f32 %v1407, %v751
        %v1412 = vmul.f32 %v1408, %v751
        %1415 = vrot.lane.b32.xlu0 %v1411, 11
        %v1416 = vpop.permute.xlu0 %1415
        %1417 = vrot.lane.b32.xlu0 %v1412, 11
        %v1418 = vpop.permute.xlu0 %1417
        %1421 = vst.msk [vmem:[%s620] sm:$0xff] %vm763, %v1416
        %1422 = vst.msk [vmem:[%s620 + $0x8] sm:$0xff] %vm763, %v1418
        %s1423 = sand.u32 %s467, 1
        %s1424 = scalar_lea.sflag [#allocation5], %s1423
        %s1425 = sand.u32 %s467, 1
        %s1426 = smul.addr %s1425, 16
        %s1427 = scalar_lea.vmem [#allocation4], %s1426
        // Predicated region
        $region101: #{tpu_custom_call.1} parent=99 // pred_check
          %p1428 = pneg %p477
        $region102: #{tpu_custom_call.1} parent=99 // pred_check_branch
          %1430 = sbr.rel (%p1428) target = $region104
        $region103: #{tpu_custom_call.1} parent=99 // pred_region
          %s1432 = ssub.s32 256, 256
          %1433 = vsyncadd %s1424, %s1432
          %s1434 = smul.addr %s34, 2
          %s1435 = smul.addr %s1434, 128
          %s1436 = scalar_lea.hbm %s20, %s1435
          %s1437 = sshll.u32 %s1427, 4
          %s1438 = int_to_ptr.vmem [resolvable:$true] %s1437
          %1443 = dma.vmem_to_hbm [thread:$0]  %s1438, 256, %s1436, %s1424, 128, 128, 8
        $region104: #{tpu_custom_call.1} parent=99 // pred_fallthru
          _
      $region100: #{tpu_custom_call.1} parent=5 // pred_fallthru
        _
      %p1444 = scmp.le.s32.totalorder 2, %s29
      // Predicated region
      $region105: #{tpu_custom_call.1} parent=5 // pred_check
        %p1445 = pneg %p1444
      $region106: #{tpu_custom_call.1} parent=5 // pred_check_branch
        %1447 = sbr.rel (%p1445) target = $region108
      $region107: #{tpu_custom_call.1} parent=5 // pred_region
        %s1448 = ssub.s32 %s29, 2
        // Predicated region
        $region109: #{tpu_custom_call.1} parent=107 // pred_check
          %p1449 = pneg %p483
        $region110: #{tpu_custom_call.1} parent=107 // pred_check_branch
          %1451 = sbr.rel (%p1449) target = $region112
        $region111: #{tpu_custom_call.1} parent=107 // pred_region
          %s1452 = sand.u32 %s468, 1
          %s1453 = scalar_lea.sflag [#allocation5], %s1452
          %s1454 = sand.u32 %s468, 1
          %s1455 = smul.addr %s1454, 16
          %s1456 = scalar_lea.vmem [#allocation4], %s1455
          %1457 = dma.done %s1453, 256
        $region112: #{tpu_custom_call.1} parent=107 // pred_fallthru
          _
      $region108: #{tpu_custom_call.1} parent=5 // pred_fallthru
        _
    $region6: #{tpu_custom_call.1} parent=1 // loop_footer
      %s33 = sadd.s32 1, %s29
    $region7: #{tpu_custom_call.1} parent=1 // loop_footer_branch
      %28 = sbr.rel target = $region3
    $region8: #{tpu_custom_call.1} parent=1 // loop_exit
      _
    %1458 = vsyncpa [#allocation5], 1
    %s1459 = scalar_lea.sflag [#allocation5], 1
    %1460 = vsyncpa %s1459, 1

</llo_original>
